<compile_context>
chip_gen: v6e
topology: v6e:2x2x1
jax: 0.10.0
libtpu: 0.0.40
codegen_flags: <defaults>
</compile_context>

<pallas_src>
import jax
import jax.numpy as jnp
from jax.experimental import pallas as pl
from jax.experimental.pallas import tpu as pltpu


def _chomp_copy_kernel(x_ref, o_ref):
    # Pure tile copy.  When the input tile is wider than the output tile
    # (kept prefix not lane-aligned), the static prefix slice drops the
    # spare lanes; otherwise it is a no-op full-tile read.
    o_ref[...] = x_ref[:, : o_ref.shape[1]]


def _round_up(v: int, m: int) -> int:
    return ((v + m - 1) // m) * m


def _largest_divisor_leq(m: int, cap: int) -> int:
    cap = max(1, min(cap, m))
    for d in range(cap, 0, -1):
        if m % d == 0:
            return d
    return 1


def chomp1d(x: jax.Array, chomp_size: int) -> jax.Array:
    """Pallas implementation of Chomp1d.forward: x[:, :, :-chomp_size]."""
    assert x.ndim == 3, "expected (N, C, L) input"
    n, c, length = x.shape
    assert 0 < chomp_size < length, "chomp_size must be in (0, L)"
    keep = length - chomp_size

    itemsize = jnp.dtype(x.dtype).itemsize
    rows = n * c

    # Small-shape bailout: for narrow keeps every store is a masked,
    # low-lane-utilization vst and the fixed pallas_call / per-step overhead
    # dominates — plain XLA slicing wins there.
    if keep < 128 or rows * keep * itemsize < (1 << 20):
        return x[:, :, :keep]

    sublane = max(8, 32 // itemsize)        # 8 / 16 / 32 rows per vreg tile
    lane = 128
    keep_al = _round_up(keep, lane)         # kept width rounded to a lane tile

    x2 = x.reshape(rows, length)            # collapse (N, C) into one row axis

    # Per-step (input tile + output tile) byte budget.  Big steps amortize the
    # ~0.35 us per-grid-step overhead (matters most on v7x's ~3.2 TB/s HBM),
    # while keeping >= ~8 steps when the problem allows so the pipeline
    # overlaps and both v7x TensorCores get work.  Double-buffered footprint
    # stays at <= 2 * step_budget = 32 MiB, safe on every generation.
    total_bytes = rows * (keep + keep_al) * itemsize
    step_budget = int(min(16 << 20, max(1 << 20, total_bytes // 8)))

    tr_min = min(sublane, rows)

    if keep_al <= length:
        # Lane-(aligned/tiled) path: input blocks never reach past keep_al,
        # so the chomped tail beyond the next 128-lane boundary is never
        # DMA'd from HBM (over-read < 128 lanes per row).
        tl_cap = max(
            lane,
            (min(keep_al, step_budget // (2 * tr_min * itemsize)) // lane) * lane,
        )
        m = keep_al // lane
        tl_div = lane * _largest_divisor_leq(m, tl_cap // lane)
        # Prefer a lane tile that divides keep_al (zero over-read past keep_al);
        # only give that up if it would shrink the step size a lot.
        tl = tl_div if tl_div * 2 >= min(tl_cap, keep_al) else min(tl_cap, keep_al)
        lane_blocks = pl.cdiv(keep, tl)
        if lane_blocks == 1:
            # Single lane block: fetch the 128-aligned prefix, write the exact
            # kept width (full-extent output block), slice in-kernel.
            in_lane, out_lane = tl, keep
        else:
            in_lane = out_lane = tl
    else:
        # chomp_size < 128 and keep not lane-aligned: rounding keep up to 128
        # would step past L, so take full-L input blocks (full-extent last dim
        # is always legal).  Over-read is only chomp_size (< 128) lanes/row.
        if tr_min * (length + keep) * itemsize > (16 << 20):
            # Even a minimal tile would bust the VMEM budget; XLA's own slice
            # copy is within chomp/L (< 128/L) of optimal here anyway.
            return x[:, :, :keep]
        in_lane, out_lane = length, keep
        lane_blocks = 1

    # Row tile under the per-step budget (dtype-sublane aligned).
    per_row_bytes = (in_lane + out_lane) * itemsize
    tr = step_budget // per_row_bytes
    tr = max(sublane, (tr // sublane) * sublane)
    if tr >= rows:
        tr = rows                            # full-extent row block: always legal

    grid = (pl.cdiv(rows, tr), lane_blocks)

    out2 = pl.pallas_call(
        _chomp_copy_kernel,
        out_shape=jax.ShapeDtypeStruct((rows, keep), x.dtype),
        grid=grid,
        in_specs=[pl.BlockSpec((tr, in_lane), lambda i, j: (i, j))],
        out_specs=pl.BlockSpec((tr, out_lane), lambda i, j: (i, j)),
        compiler_params=pltpu.CompilerParams(
            # Independent copy blocks -> megacore sharding on v7x.
            dimension_semantics=("parallel", "parallel"),
            vmem_limit_bytes=48 * 1024 * 1024,
        ),
    )(x2)

    return out2.reshape(n, c, keep)


class Chomp1d:
    """Mirror of the PyTorch module's interface."""

    def __init__(self, chomp_size: int):
        self.chomp_size = chomp_size

    def __call__(self, x: jax.Array) -> jax.Array:
        return chomp1d(x, self.chomp_size)


if __name__ == "__main__":
    k0, k1, k2 = jax.random.split(jax.random.PRNGKey(0), 3)

    # 1) Module-consistent tiny shape (takes the small-shape XLA bailout).
    x_small = jax.random.normal(k0, (2, 4, 16), dtype=jnp.float32)
    out = jax.block_until_ready(Chomp1d(3)(x_small))
    assert out.shape == (2, 4, 13) and out.dtype == x_small.dtype
    assert jnp.array_equal(out, x_small[:, :, :-3])

    # 2) Pallas lane-aligned path (keep_al <= L; partial row/lane edge blocks).
    x_a = jax.random.normal(k1, (2, 64, 2200), dtype=jnp.float32)
    out = jax.block_until_ready(chomp1d(x_a, 150))
    assert out.shape == (2, 64, 2050)
    assert jnp.array_equal(out, x_a[:, :, :-150])

    # 3) Pallas full-L fallback path (chomp < 128 and keep not lane-aligned).
    x_b = jax.random.normal(k2, (2, 64, 2113), dtype=jnp.float32)
    out = jax.block_until_ready(chomp1d(x_b, 50))
    assert out.shape == (2, 64, 2063)
    assert jnp.array_equal(out, x_b[:, :, :-50])

    print("KERNEL_OK")
</pallas_src>

<mosaic_0001>
module attributes {stable_mosaic.version = 11 : i64} {
  func.func @_chomp_copy_kernel(%arg0: i32, %arg1: i32, %arg2: memref<56x2176xf32, #tpu.memory_space<vmem>>, %arg3: memref<56x2050xf32, #tpu.memory_space<vmem>>) attributes {dimension_semantics = [#tpu.dimension_semantics<parallel>, #tpu.dimension_semantics<parallel>], iteration_bounds = array<i64: 3, 1>, scalar_prefetch = 0 : i64, scratch_operands = 0 : i64, tpu.core_type = #tpu.core_type<tc>, window_params = [{transform_indices = @transform_0, window_bounds = array<i64: 56, 2176>}, {transform_indices = @transform_1, window_bounds = array<i64: 56, 2050>}]} {
    %c0 = arith.constant 0 : index
    %c0_0 = arith.constant 0 : index
    %0 = vector.load %arg2[%c0, %c0_0] : memref<56x2176xf32, #tpu.memory_space<vmem>>, vector<56x2050xf32>
    %c0_1 = arith.constant 0 : index
    %c0_2 = arith.constant 0 : index
    %1 = vector.load %arg3[%c0_1, %c0_2] : memref<56x2050xf32, #tpu.memory_space<vmem>>, vector<56x2050xf32>
    tpu.vector_store %arg3[%c0_1, %c0_2], %0 {strides = array<i32>} : memref<56x2050xf32, #tpu.memory_space<vmem>>, vector<56x2050xf32>,
    return
  }
  func.func @transform_0(%arg0: i32, %arg1: i32) -> (i32, i32) {
    %c0_i32 = arith.constant 0 : i32
    return %arg0, %arg1 : i32, i32
  }
  func.func @transform_1(%arg0: i32, %arg1: i32) -> (i32, i32) {
    %c0_i32 = arith.constant 0 : i32
    return %arg0, %arg1 : i32, i32
  }
}

</mosaic_0001>

<llo_original>
// kernel: tpu_custom_call.1
$region0: #{tpu_custom_call.1}
  #allocation0 [shape = 'u32[]', space=smem, size = 0x4, offset = 0x4, fixed_abs, tag = 'smem constant byte address 0x4 - core index']
  #allocation1 [shape = 'u32[144,128]{1,0:T(1,128)}', space=vmem, size = 0x12000, scoped, tag = 'internal scratch']
  %s0 = inlined_call_operand.vmem [shape: f32[128,2200], index: 0, kind: input, shape index: {}]
  %s1 = inlined_call_operand.vmem [shape: f32[128,2050], index: 1, kind: output, shape index: {}]
  %s2 = sld [smem:[#allocation0]]
  $region157: #{tpu_custom_call.1} parent=0
    _
  %s4 = ssub.s32 1, %s2
  %s5 = scalar_select 0, %s4, %s2
  $region1: #{tpu_custom_call.1} parent=0
    #allocation2 [shape = 'u8[974848]{0}', space=vmem, size = 0xee000, scoped, tag = 'input window, operand 0']
    #allocation3 [shape = 'u8[974848]{0}', space=vmem, size = 0xee000, scoped, tag = 'output window, operand 0']
    loop: start=0, step=1, limit=5
    $region2: #{tpu_custom_call.1} parent=1 // loop_pre_header
      _
    $region3: #{tpu_custom_call.1} parent=1 // loop_header
      %s7 = sphi 0, %s11
      %p8 = scmp.ge.s32.totalorder %s7, 5
      %s14 = sphi 0, %s26
      %s15 = sphi 0, %s22
      %s16 = sphi 0, %s14
      %s17 = sphi 0, %s15
      %s18 = sphi 0, %s16
      %s19 = sphi 0, %s17
      %s31 = sphi 0, %s33
      %s34 = sphi 0, %s31
      %s35 = sphi 0, %s34
      %s51 = sphi 0, %s35
      %s59 = sphi 0, %s61
      %s62 = sphi 0, %s59
      %s63 = sphi 0, %s62
      %s79 = sphi 0, %s63
    $region4: #{tpu_custom_call.1} parent=1 // loop_header_branch
      %10 = sbr.rel (%p8) target = $region8
    $region5: #{tpu_custom_call.1} parent=1 // loop_body
      %s12 = ssub.s32 %s7, 1
      %s13 = ssub.s32 %s7, 2
      %s20 = sadd.s32 1, %s15
      %p21 = scmp.ge.s32.totalorder %s20, 1
      %s22 = scalar_select %p21, 0, %s20
      %s23 = sadd.s32 1, %s14
      %s24 = scalar_select %p21, %s23, %s14
      %p25 = scmp.ge.s32.totalorder %s24, 3
      %s26 = scalar_select %p25, 0, %s24
      %s27 = ssub.s32 %s14, %s26
      %s28 = ssub.s32 %s15, %s22
      %s29 = sor.u32 %s27, %s28
      %p30 = scmp.eq.s32.totalorder %s29, 0
      %s32 = sadd.s32 %s31, 1
      %s33 = scalar_select %p30, %s31, %s32
      %p36 = pneg %p30
      %p37 = scmp.eq.s32.totalorder %s7, 2
      %p38 = por %p36, %p37
      %p39 = scmp.ne.s32.totalorder %s31, %s34
      %p40 = scmp.eq.s32.totalorder %s7, 0
      %p41 = por %p39, %p40
      %p42 = scmp.ne.s32.totalorder %s31, %s34
      %p43 = scmp.eq.s32.totalorder %s12, 2
      %p44 = por %p42, %p43
      %p45 = scmp.ne.s32.totalorder %s34, %s35
      %p46 = scmp.eq.s32.totalorder %s12, 0
      %p47 = por %p45, %p46
      %p48 = scmp.ne.s32.totalorder %s34, %s35
      %p49 = scmp.eq.s32.totalorder %s13, 2
      %p50 = por %p48, %p49
      %p52 = scmp.ne.s32.totalorder %s35, %s51
      %p53 = scmp.eq.s32.totalorder %s13, 0
      %p54 = por %p52, %p53
      %s55 = ssub.s32 %s14, %s26
      %s56 = ssub.s32 %s15, %s22
      %s57 = sor.u32 %s55, %s56
      %p58 = scmp.eq.s32.totalorder %s57, 0
      %s60 = sadd.s32 %s59, 1
      %s61 = scalar_select %p58, %s59, %s60
      %p64 = pneg %p58
      %p65 = scmp.eq.s32.totalorder %s7, 2
      %p66 = por %p64, %p65
      %p67 = scmp.ne.s32.totalorder %s59, %s62
      %p68 = scmp.eq.s32.totalorder %s7, 0
      %p69 = por %p67, %p68
      %p70 = scmp.ne.s32.totalorder %s59, %s62
      %p71 = scmp.eq.s32.totalorder %s12, 2
      %p72 = por %p70, %p71
      %p73 = scmp.ne.s32.totalorder %s62, %s63
      %p74 = scmp.eq.s32.totalorder %s12, 0
      %p75 = por %p73, %p74
      %p76 = scmp.ne.s32.totalorder %s62, %s63
      %p77 = scmp.eq.s32.totalorder %s13, 2
      %p78 = por %p76, %p77
      %p80 = scmp.ne.s32.totalorder %s63, %s79
      %p81 = scmp.eq.s32.totalorder %s13, 0
      %p82 = por %p80, %p81
      %p83 = scmp.le.s32.totalorder 1, %s7
      %p84 = scmp.lt.s32.totalorder %s7, 4
      %p85 = pnand %p83, %p84
      %p86 = pneg %p85
      // Predicated region
      $region9: #{tpu_custom_call.1} parent=5 // pred_check
        _
      $region10: #{tpu_custom_call.1} parent=5 // pred_check_branch
        %88 = sbr.rel (%p85) target = $region12
      $region11: #{tpu_custom_call.1} parent=5 // pred_region
        %s89 = ssub.s32 %s7, 1
      $region12: #{tpu_custom_call.1} parent=5 // pred_fallthru
        _
      %p90 = scmp.lt.s32.totalorder %s7, 3
      // Predicated region
      $region13: #{tpu_custom_call.1} parent=5 // pred_check
        %p91 = pneg %p90
      $region14: #{tpu_custom_call.1} parent=5 // pred_check_branch
        %93 = sbr.rel (%p91) target = $region16
      $region15: #{tpu_custom_call.1} parent=5 // pred_region
        // Predicated region
        $region17: #{tpu_custom_call.1} parent=15 // pred_check
          %p94 = pneg %p41
        $region18: #{tpu_custom_call.1} parent=15 // pred_check_branch
          %96 = sbr.rel (%p94) target = $region20
        $region19: #{tpu_custom_call.1} parent=15 // pred_region
          %s97 = sand.u32 %s31, 1
          %s98 = sand.u32 %s31, 1
          %s99 = smul.addr %s98, 952
          %s100 = scalar_lea.vmem [#allocation2], %s99
          %s101 = smul.u32 7, %s14
          %s102 = smul.u32 17, %s15
          %s103 = ssub.s32 16, %s101
          %p104 = scmp.lt.s32.totalorder %s103, 7
          %s105 = scalar_select %p104, %s103, 7
          %s106 = smul.u32 128, %s105
          %s107 = ssub.s32 18, %s102
          %p108 = scmp.lt.s32.totalorder %s107, 17
          %s109 = scalar_select %p108, %s107, 17
          %s110 = smul.u32 %s106, %s109
          %p111 = scmp.ne.s32.totalorder 0, %s110
          %s112 = smul.addr %s101, 18
          %s113 = sadd.s32 %s102, %s112
          %s114 = smul.addr %s113, 8
          %s115 = scalar_lea.vmem %s0, %s114
          %s116 = smul.u32 %s109, 8
          // Predicated region
          $region21: #{tpu_custom_call.1} parent=19 // pred_check
            %p117 = pneg %p111
          $region22: #{tpu_custom_call.1} parent=19 // pred_check_branch
            %119 = sbr.rel (%p117) target = $region24
          $region23: #{tpu_custom_call.1} parent=19 // pred_region
            %p120 = scmp.lt.u32.totalorder %s116, 8
            %p121 = pneg %p120
            // Predicated region
            $region25: #{tpu_custom_call.1} parent=23 // pred_check
              _
            $region26: #{tpu_custom_call.1} parent=23 // pred_check_branch
              %123 = sbr.rel (%p120) target = $region28
            $region27: #{tpu_custom_call.1} parent=23 // pred_region
              %s186 = sand.u32 %s116, 7
              %p187 = scmp.eq.s32.totalorder %s186, 0
              // Predicated region
              $region47: #{tpu_custom_call.1} parent=27 // pred_check
                %p188 = pneg %p187
              $region48: #{tpu_custom_call.1} parent=27 // pred_check_branch
                %190 = sbr.rel (%p188) target = $region50
              $region49: #{tpu_custom_call.1} parent=27 // pred_region
                %s191 = sshrl.u32 %s116, 3
                %s192 = sdiv.u32.pop %s105, 7
                %s193 = srem.u32.pop %s105, 7
                %s194 = sdiv.u32.pop %s191, 12
                %s195 = srem.u32.pop %s191, 12
                %s196 = smul.u32 %s192, %s194
                // While loop
                $region51: #{tpu_custom_call.1} parent=49 // loop_pre_header
                  _
                $region52: #{tpu_custom_call.1} parent=49 // loop_header
                  %s200 = sphi 0, %s202
                  %p201 = scmp.ge.s32.totalorder %s200, %s196
                  %s205 = sphi 0, %s383
                  %s206 = sphi 0, %s379
                  %s207 = sphi %s115, %s390
                  %s208 = sphi %s100, %s391
                $region53: #{tpu_custom_call.1} parent=49 // loop_header_branch
                  %204 = sbr.rel (%p201) target = $region57
                $region54: #{tpu_custom_call.1} parent=49 // loop_body
                  %v209 = vld [vmem:[%s207] sm:$0xff]
                  %210 = vst [vmem:[%s208] sm:$0xff] %v209
                  %v211 = vld [vmem:[%s207 + $0x8] sm:$0xff]
                  %212 = vst [vmem:[%s208 + $0x8] sm:$0xff] %v211
                  %v213 = vld [vmem:[%s207 + $0x10] sm:$0xff]
                  %214 = vst [vmem:[%s208 + $0x10] sm:$0xff] %v213
                  %v215 = vld [vmem:[%s207 + $0x18] sm:$0xff]
                  %216 = vst [vmem:[%s208 + $0x18] sm:$0xff] %v215
                  %v217 = vld [vmem:[%s207 + $0x20] sm:$0xff]
                  %218 = vst [vmem:[%s208 + $0x20] sm:$0xff] %v217
                  %v219 = vld [vmem:[%s207 + $0x28] sm:$0xff]
                  %220 = vst [vmem:[%s208 + $0x28] sm:$0xff] %v219
                  %v221 = vld [vmem:[%s207 + $0x30] sm:$0xff]
                  %222 = vst [vmem:[%s208 + $0x30] sm:$0xff] %v221
                  %v223 = vld [vmem:[%s207 + $0x38] sm:$0xff]
                  %224 = vst [vmem:[%s208 + $0x38] sm:$0xff] %v223
                  %v225 = vld [vmem:[%s207 + $0x40] sm:$0xff]
                  %226 = vst [vmem:[%s208 + $0x40] sm:$0xff] %v225
                  %v227 = vld [vmem:[%s207 + $0x48] sm:$0xff]
                  %228 = vst [vmem:[%s208 + $0x48] sm:$0xff] %v227
                  %v229 = vld [vmem:[%s207 + $0x50] sm:$0xff]
                  %230 = vst [vmem:[%s208 + $0x50] sm:$0xff] %v229
                  %v231 = vld [vmem:[%s207 + $0x58] sm:$0xff]
                  %232 = vst [vmem:[%s208 + $0x58] sm:$0xff] %v231
                  %v233 = vld [vmem:[%s207 + $0x90] sm:$0xff]
                  %234 = vst [vmem:[%s208 + $0x88] sm:$0xff] %v233
                  %v235 = vld [vmem:[%s207 + $0x98] sm:$0xff]
                  %236 = vst [vmem:[%s208 + $0x90] sm:$0xff] %v235
                  %v237 = vld [vmem:[%s207 + $0xa0] sm:$0xff]
                  %238 = vst [vmem:[%s208 + $0x98] sm:$0xff] %v237
                  %v239 = vld [vmem:[%s207 + $0xa8] sm:$0xff]
                  %240 = vst [vmem:[%s208 + $0xa0] sm:$0xff] %v239
                  %v241 = vld [vmem:[%s207 + $0xb0] sm:$0xff]
                  %242 = vst [vmem:[%s208 + $0xa8] sm:$0xff] %v241
                  %v243 = vld [vmem:[%s207 + $0xb8] sm:$0xff]
                  %244 = vst [vmem:[%s208 + $0xb0] sm:$0xff] %v243
                  %v245 = vld [vmem:[%s207 + $0xc0] sm:$0xff]
                  %246 = vst [vmem:[%s208 + $0xb8] sm:$0xff] %v245
                  %v247 = vld [vmem:[%s207 + $0xc8] sm:$0xff]
                  %248 = vst [vmem:[%s208 + $0xc0] sm:$0xff] %v247
                  %v249 = vld [vmem:[%s207 + $0xd0] sm:$0xff]
                  %250 = vst [vmem:[%s208 + $0xc8] sm:$0xff] %v249
                  %v251 = vld [vmem:[%s207 + $0xd8] sm:$0xff]
                  %252 = vst [vmem:[%s208 + $0xd0] sm:$0xff] %v251
                  %v253 = vld [vmem:[%s207 + $0xe0] sm:$0xff]
                  %254 = vst [vmem:[%s208 + $0xd8] sm:$0xff] %v253
                  %v255 = vld [vmem:[%s207 + $0xe8] sm:$0xff]
                  %256 = vst [vmem:[%s208 + $0xe0] sm:$0xff] %v255
                  %v257 = vld [vmem:[%s207 + $0x120] sm:$0xff]
                  %258 = vst [vmem:[%s208 + $0x110] sm:$0xff] %v257
                  %v259 = vld [vmem:[%s207 + $0x128] sm:$0xff]
                  %260 = vst [vmem:[%s208 + $0x118] sm:$0xff] %v259
                  %v261 = vld [vmem:[%s207 + $0x130] sm:$0xff]
                  %262 = vst [vmem:[%s208 + $0x120] sm:$0xff] %v261
                  %v263 = vld [vmem:[%s207 + $0x138] sm:$0xff]
                  %264 = vst [vmem:[%s208 + $0x128] sm:$0xff] %v263
                  %v265 = vld [vmem:[%s207 + $0x140] sm:$0xff]
                  %266 = vst [vmem:[%s208 + $0x130] sm:$0xff] %v265
                  %v267 = vld [vmem:[%s207 + $0x148] sm:$0xff]
                  %268 = vst [vmem:[%s208 + $0x138] sm:$0xff] %v267
                  %v269 = vld [vmem:[%s207 + $0x150] sm:$0xff]
                  %270 = vst [vmem:[%s208 + $0x140] sm:$0xff] %v269
                  %v271 = vld [vmem:[%s207 + $0x158] sm:$0xff]
                  %272 = vst [vmem:[%s208 + $0x148] sm:$0xff] %v271
                  %v273 = vld [vmem:[%s207 + $0x160] sm:$0xff]
                  %274 = vst [vmem:[%s208 + $0x150] sm:$0xff] %v273
                  %v275 = vld [vmem:[%s207 + $0x168] sm:$0xff]
                  %276 = vst [vmem:[%s208 + $0x158] sm:$0xff] %v275
                  %v277 = vld [vmem:[%s207 + $0x170] sm:$0xff]
                  %278 = vst [vmem:[%s208 + $0x160] sm:$0xff] %v277
                  %v279 = vld [vmem:[%s207 + $0x178] sm:$0xff]
                  %280 = vst [vmem:[%s208 + $0x168] sm:$0xff] %v279
                  %v281 = vld [vmem:[%s207 + $0x1b0] sm:$0xff]
                  %282 = vst [vmem:[%s208 + $0x198] sm:$0xff] %v281
                  %v283 = vld [vmem:[%s207 + $0x1b8] sm:$0xff]
                  %284 = vst [vmem:[%s208 + $0x1a0] sm:$0xff] %v283
                  %v285 = vld [vmem:[%s207 + $0x1c0] sm:$0xff]
                  %286 = vst [vmem:[%s208 + $0x1a8] sm:$0xff] %v285
                  %v287 = vld [vmem:[%s207 + $0x1c8] sm:$0xff]
                  %288 = vst [vmem:[%s208 + $0x1b0] sm:$0xff] %v287
                  %v289 = vld [vmem:[%s207 + $0x1d0] sm:$0xff]
                  %290 = vst [vmem:[%s208 + $0x1b8] sm:$0xff] %v289
                  %v291 = vld [vmem:[%s207 + $0x1d8] sm:$0xff]
                  %292 = vst [vmem:[%s208 + $0x1c0] sm:$0xff] %v291
                  %v293 = vld [vmem:[%s207 + $0x1e0] sm:$0xff]
                  %294 = vst [vmem:[%s208 + $0x1c8] sm:$0xff] %v293
                  %v295 = vld [vmem:[%s207 + $0x1e8] sm:$0xff]
                  %296 = vst [vmem:[%s208 + $0x1d0] sm:$0xff] %v295
                  %v297 = vld [vmem:[%s207 + $0x1f0] sm:$0xff]
                  %298 = vst [vmem:[%s208 + $0x1d8] sm:$0xff] %v297
                  %v299 = vld [vmem:[%s207 + $0x1f8] sm:$0xff]
                  %300 = vst [vmem:[%s208 + $0x1e0] sm:$0xff] %v299
                  %v301 = vld [vmem:[%s207 + $0x200] sm:$0xff]
                  %302 = vst [vmem:[%s208 + $0x1e8] sm:$0xff] %v301
                  %v303 = vld [vmem:[%s207 + $0x208] sm:$0xff]
                  %304 = vst [vmem:[%s208 + $0x1f0] sm:$0xff] %v303
                  %v305 = vld [vmem:[%s207 + $0x240] sm:$0xff]
                  %306 = vst [vmem:[%s208 + $0x220] sm:$0xff] %v305
                  %v307 = vld [vmem:[%s207 + $0x248] sm:$0xff]
                  %308 = vst [vmem:[%s208 + $0x228] sm:$0xff] %v307
                  %v309 = vld [vmem:[%s207 + $0x250] sm:$0xff]
                  %310 = vst [vmem:[%s208 + $0x230] sm:$0xff] %v309
                  %v311 = vld [vmem:[%s207 + $0x258] sm:$0xff]
                  %312 = vst [vmem:[%s208 + $0x238] sm:$0xff] %v311
                  %v313 = vld [vmem:[%s207 + $0x260] sm:$0xff]
                  %314 = vst [vmem:[%s208 + $0x240] sm:$0xff] %v313
                  %v315 = vld [vmem:[%s207 + $0x268] sm:$0xff]
                  %316 = vst [vmem:[%s208 + $0x248] sm:$0xff] %v315
                  %v317 = vld [vmem:[%s207 + $0x270] sm:$0xff]
                  %318 = vst [vmem:[%s208 + $0x250] sm:$0xff] %v317
                  %v319 = vld [vmem:[%s207 + $0x278] sm:$0xff]
                  %320 = vst [vmem:[%s208 + $0x258] sm:$0xff] %v319
                  %v321 = vld [vmem:[%s207 + $0x280] sm:$0xff]
                  %322 = vst [vmem:[%s208 + $0x260] sm:$0xff] %v321
                  %v323 = vld [vmem:[%s207 + $0x288] sm:$0xff]
                  %324 = vst [vmem:[%s208 + $0x268] sm:$0xff] %v323
                  %v325 = vld [vmem:[%s207 + $0x290] sm:$0xff]
                  %326 = vst [vmem:[%s208 + $0x270] sm:$0xff] %v325
                  %v327 = vld [vmem:[%s207 + $0x298] sm:$0xff]
                  %328 = vst [vmem:[%s208 + $0x278] sm:$0xff] %v327
                  %v329 = vld [vmem:[%s207 + $0x2d0] sm:$0xff]
                  %330 = vst [vmem:[%s208 + $0x2a8] sm:$0xff] %v329
                  %v331 = vld [vmem:[%s207 + $0x2d8] sm:$0xff]
                  %332 = vst [vmem:[%s208 + $0x2b0] sm:$0xff] %v331
                  %v333 = vld [vmem:[%s207 + $0x2e0] sm:$0xff]
                  %334 = vst [vmem:[%s208 + $0x2b8] sm:$0xff] %v333
                  %v335 = vld [vmem:[%s207 + $0x2e8] sm:$0xff]
                  %336 = vst [vmem:[%s208 + $0x2c0] sm:$0xff] %v335
                  %v337 = vld [vmem:[%s207 + $0x2f0] sm:$0xff]
                  %338 = vst [vmem:[%s208 + $0x2c8] sm:$0xff] %v337
                  %v339 = vld [vmem:[%s207 + $0x2f8] sm:$0xff]
                  %340 = vst [vmem:[%s208 + $0x2d0] sm:$0xff] %v339
                  %v341 = vld [vmem:[%s207 + $0x300] sm:$0xff]
                  %342 = vst [vmem:[%s208 + $0x2d8] sm:$0xff] %v341
                  %v343 = vld [vmem:[%s207 + $0x308] sm:$0xff]
                  %344 = vst [vmem:[%s208 + $0x2e0] sm:$0xff] %v343
                  %v345 = vld [vmem:[%s207 + $0x310] sm:$0xff]
                  %346 = vst [vmem:[%s208 + $0x2e8] sm:$0xff] %v345
                  %v347 = vld [vmem:[%s207 + $0x318] sm:$0xff]
                  %348 = vst [vmem:[%s208 + $0x2f0] sm:$0xff] %v347
                  %v349 = vld [vmem:[%s207 + $0x320] sm:$0xff]
                  %350 = vst [vmem:[%s208 + $0x2f8] sm:$0xff] %v349
                  %v351 = vld [vmem:[%s207 + $0x328] sm:$0xff]
                  %352 = vst [vmem:[%s208 + $0x300] sm:$0xff] %v351
                  %v353 = vld [vmem:[%s207 + $0x360] sm:$0xff]
                  %354 = vst [vmem:[%s208 + $0x330] sm:$0xff] %v353
                  %v355 = vld [vmem:[%s207 + $0x368] sm:$0xff]
                  %356 = vst [vmem:[%s208 + $0x338] sm:$0xff] %v355
                  %v357 = vld [vmem:[%s207 + $0x370] sm:$0xff]
                  %358 = vst [vmem:[%s208 + $0x340] sm:$0xff] %v357
                  %v359 = vld [vmem:[%s207 + $0x378] sm:$0xff]
                  %360 = vst [vmem:[%s208 + $0x348] sm:$0xff] %v359
                  %v361 = vld [vmem:[%s207 + $0x380] sm:$0xff]
                  %362 = vst [vmem:[%s208 + $0x350] sm:$0xff] %v361
                  %v363 = vld [vmem:[%s207 + $0x388] sm:$0xff]
                  %364 = vst [vmem:[%s208 + $0x358] sm:$0xff] %v363
                  %v365 = vld [vmem:[%s207 + $0x390] sm:$0xff]
                  %366 = vst [vmem:[%s208 + $0x360] sm:$0xff] %v365
                  %v367 = vld [vmem:[%s207 + $0x398] sm:$0xff]
                  %368 = vst [vmem:[%s208 + $0x368] sm:$0xff] %v367
                  %v369 = vld [vmem:[%s207 + $0x3a0] sm:$0xff]
                  %370 = vst [vmem:[%s208 + $0x370] sm:$0xff] %v369
                  %v371 = vld [vmem:[%s207 + $0x3a8] sm:$0xff]
                  %372 = vst [vmem:[%s208 + $0x378] sm:$0xff] %v371
                  %v373 = vld [vmem:[%s207 + $0x3b0] sm:$0xff]
                  %374 = vst [vmem:[%s208 + $0x380] sm:$0xff] %v373
                  %v375 = vld [vmem:[%s207 + $0x3b8] sm:$0xff]
                  %376 = vst [vmem:[%s208 + $0x388] sm:$0xff] %v375
                  %s377 = sadd.s32 1, %s206
                  %p378 = scmp.ge.s32.totalorder %s377, %s194
                  %s379 = scalar_select %p378, 0, %s377
                  %s380 = sadd.s32 1, %s205
                  %s381 = scalar_select %p378, %s380, %s205
                  %p382 = scmp.ge.s32.totalorder %s381, %s192
                  %s383 = scalar_select %p382, 0, %s381
                  %s384 = smul.u32 %s383, 1008
                  %s385 = smul.u32 %s379, 96
                  %s386 = sadd.s32 %s384, %s385
                  %s387 = smul.u32 %s383, 952
                  %s388 = smul.u32 %s379, 96
                  %s389 = sadd.s32 %s387, %s388
                  %s390 = scalar_lea.vmem %s115, %s386
                  %s391 = scalar_lea.vmem %s100, %s389 [#allocation2]
                $region55: #{tpu_custom_call.1} parent=49 // loop_footer
                  %s202 = sadd.s32 %s200, 1
                $region56: #{tpu_custom_call.1} parent=49 // loop_footer_branch
                  %199 = sbr.rel target = $region52
                $region57: #{tpu_custom_call.1} parent=49 // loop_exit
                  _
                %s392 = sdiv.u32.pop %s191, 12
                %s393 = srem.u32.pop %s191, 12
                %s394 = sdiv.u32.pop %s105, 7
                %s395 = srem.u32.pop %s105, 7
                %s396 = smul.u32 %s394, 7
                %s397 = smul.u32 144, %s396
                %s398 = scalar_lea.vmem %s115, %s397
                %s399 = smul.u32 136, %s396
                %s400 = scalar_lea.vmem %s100, %s399 [#allocation2]
                %s401 = smul.u32 %s395, %s392
                // While loop
                $region58: #{tpu_custom_call.1} parent=49 // loop_pre_header
                  _
                $region59: #{tpu_custom_call.1} parent=49 // loop_header
                  %s405 = sphi 0, %s407
                  %p406 = scmp.ge.s32.totalorder %s405, %s401
                  %s410 = sphi 0, %s444
                  %s411 = sphi 0, %s440
                  %s412 = sphi %s398, %s451
                  %s413 = sphi %s400, %s452
                $region60: #{tpu_custom_call.1} parent=49 // loop_header_branch
                  %409 = sbr.rel (%p406) target = $region64
                $region61: #{tpu_custom_call.1} parent=49 // loop_body
                  %v414 = vld [vmem:[%s412] sm:$0xff]
                  %415 = vst [vmem:[%s413] sm:$0xff] %v414
                  %v416 = vld [vmem:[%s412 + $0x8] sm:$0xff]
                  %417 = vst [vmem:[%s413 + $0x8] sm:$0xff] %v416
                  %v418 = vld [vmem:[%s412 + $0x10] sm:$0xff]
                  %419 = vst [vmem:[%s413 + $0x10] sm:$0xff] %v418
                  %v420 = vld [vmem:[%s412 + $0x18] sm:$0xff]
                  %421 = vst [vmem:[%s413 + $0x18] sm:$0xff] %v420
                  %v422 = vld [vmem:[%s412 + $0x20] sm:$0xff]
                  %423 = vst [vmem:[%s413 + $0x20] sm:$0xff] %v422
                  %v424 = vld [vmem:[%s412 + $0x28] sm:$0xff]
                  %425 = vst [vmem:[%s413 + $0x28] sm:$0xff] %v424
                  %v426 = vld [vmem:[%s412 + $0x30] sm:$0xff]
                  %427 = vst [vmem:[%s413 + $0x30] sm:$0xff] %v426
                  %v428 = vld [vmem:[%s412 + $0x38] sm:$0xff]
                  %429 = vst [vmem:[%s413 + $0x38] sm:$0xff] %v428
                  %v430 = vld [vmem:[%s412 + $0x40] sm:$0xff]
                  %431 = vst [vmem:[%s413 + $0x40] sm:$0xff] %v430
                  %v432 = vld [vmem:[%s412 + $0x48] sm:$0xff]
                  %433 = vst [vmem:[%s413 + $0x48] sm:$0xff] %v432
                  %v434 = vld [vmem:[%s412 + $0x50] sm:$0xff]
                  %435 = vst [vmem:[%s413 + $0x50] sm:$0xff] %v434
                  %v436 = vld [vmem:[%s412 + $0x58] sm:$0xff]
                  %437 = vst [vmem:[%s413 + $0x58] sm:$0xff] %v436
                  %s438 = sadd.s32 1, %s411
                  %p439 = scmp.ge.s32.totalorder %s438, %s392
                  %s440 = scalar_select %p439, 0, %s438
                  %s441 = sadd.s32 1, %s410
                  %s442 = scalar_select %p439, %s441, %s410
                  %p443 = scmp.ge.s32.totalorder %s442, %s395
                  %s444 = scalar_select %p443, 0, %s442
                  %s445 = smul.u32 %s444, 144
                  %s446 = smul.u32 %s440, 96
                  %s447 = sadd.s32 %s445, %s446
                  %s448 = smul.u32 %s444, 136
                  %s449 = smul.u32 %s440, 96
                  %s450 = sadd.s32 %s448, %s449
                  %s451 = scalar_lea.vmem %s398, %s447
                  %s452 = scalar_lea.vmem %s400, %s450 [#allocation2]
                $region62: #{tpu_custom_call.1} parent=49 // loop_footer
                  %s407 = sadd.s32 %s405, 1
                $region63: #{tpu_custom_call.1} parent=49 // loop_footer_branch
                  %404 = sbr.rel target = $region59
                $region64: #{tpu_custom_call.1} parent=49 // loop_exit
                  _
                %s453 = sdiv.u32.pop %s191, 12
                %s454 = srem.u32.pop %s191, 12
                %s455 = smul.u32 %s453, 12
                %s456 = smul.u32 128, %s455
                %s457 = sshra.s32 %s456, 4
                %s458 = scalar_lea.vmem %s115, %s457
                %s459 = smul.u32 128, %s455
                %s460 = sshra.s32 %s459, 4
                %s461 = scalar_lea.vmem %s100, %s460 [#allocation2]
                %s462 = smul.u32 %s105, %s454
                // While loop
                $region65: #{tpu_custom_call.1} parent=49 // loop_pre_header
                  _
                $region66: #{tpu_custom_call.1} parent=49 // loop_header
                  %s466 = sphi 0, %s468
                  %p467 = scmp.ge.s32.totalorder %s466, %s462
                  %s471 = sphi 0, %s483
                  %s472 = sphi 0, %s479
                  %s473 = sphi %s458, %s490
                  %s474 = sphi %s461, %s491
                $region67: #{tpu_custom_call.1} parent=49 // loop_header_branch
                  %470 = sbr.rel (%p467) target = $region71
                $region68: #{tpu_custom_call.1} parent=49 // loop_body
                  %v475 = vld [vmem:[%s473] sm:$0xff]
                  %476 = vst [vmem:[%s474] sm:$0xff] %v475
                  %s477 = sadd.s32 1, %s472
                  %p478 = scmp.ge.s32.totalorder %s477, %s454
                  %s479 = scalar_select %p478, 0, %s477
                  %s480 = sadd.s32 1, %s471
                  %s481 = scalar_select %p478, %s480, %s471
                  %p482 = scmp.ge.s32.totalorder %s481, %s105
                  %s483 = scalar_select %p482, 0, %s481
                  %s484 = smul.u32 %s483, 144
                  %s485 = smul.u32 %s479, 8
                  %s486 = sadd.s32 %s484, %s485
                  %s487 = smul.u32 %s483, 136
                  %s488 = smul.u32 %s479, 8
                  %s489 = sadd.s32 %s487, %s488
                  %s490 = scalar_lea.vmem %s458, %s486
                  %s491 = scalar_lea.vmem %s461, %s489 [#allocation2]
                $region69: #{tpu_custom_call.1} parent=49 // loop_footer
                  %s468 = sadd.s32 %s466, 1
                $region70: #{tpu_custom_call.1} parent=49 // loop_footer_branch
                  %465 = sbr.rel target = $region66
                $region71: #{tpu_custom_call.1} parent=49 // loop_exit
                  _
              $region50: #{tpu_custom_call.1} parent=27 // pred_fallthru
                _
              %p492 = pneg %p187
              // Predicated region
              $region72: #{tpu_custom_call.1} parent=27 // pred_check
                _
              $region73: #{tpu_custom_call.1} parent=27 // pred_check_branch
                %494 = sbr.rel (%p187) target = $region75
              $region74: #{tpu_custom_call.1} parent=27 // pred_region
                %s495 = sand.u32 %s116, 7
                %s496 = ssub.s32 %s116, %s495
                %s497 = scalar_lea.vmem %s115, %s496
                %s498 = ssub.s32 %s116, %s495
                %s499 = scalar_lea.vmem %s100, %s498 [#allocation2]
                %s500 = sshrl.u32 %s116, 3
                %s501 = sdiv.u32.pop %s105, 7
                %s502 = srem.u32.pop %s105, 7
                %s503 = sdiv.u32.pop %s500, 12
                %s504 = srem.u32.pop %s500, 12
                %s505 = smul.u32 %s501, %s503
                // While loop
                $region76: #{tpu_custom_call.1} parent=74 // loop_pre_header
                  _
                $region77: #{tpu_custom_call.1} parent=74 // loop_header
                  %s509 = sphi 0, %s511
                  %p510 = scmp.ge.s32.totalorder %s509, %s505
                  %s514 = sphi 0, %s692
                  %s515 = sphi 0, %s688
                  %s516 = sphi %s115, %s699
                  %s517 = sphi %s100, %s700
                $region78: #{tpu_custom_call.1} parent=74 // loop_header_branch
                  %513 = sbr.rel (%p510) target = $region82
                $region79: #{tpu_custom_call.1} parent=74 // loop_body
                  %v518 = vld [vmem:[%s516] sm:$0xff]
                  %519 = vst [vmem:[%s517] sm:$0xff] %v518
                  %v520 = vld [vmem:[%s516 + $0x8] sm:$0xff]
                  %521 = vst [vmem:[%s517 + $0x8] sm:$0xff] %v520
                  %v522 = vld [vmem:[%s516 + $0x10] sm:$0xff]
                  %523 = vst [vmem:[%s517 + $0x10] sm:$0xff] %v522
                  %v524 = vld [vmem:[%s516 + $0x18] sm:$0xff]
                  %525 = vst [vmem:[%s517 + $0x18] sm:$0xff] %v524
                  %v526 = vld [vmem:[%s516 + $0x20] sm:$0xff]
                  %527 = vst [vmem:[%s517 + $0x20] sm:$0xff] %v526
                  %v528 = vld [vmem:[%s516 + $0x28] sm:$0xff]
                  %529 = vst [vmem:[%s517 + $0x28] sm:$0xff] %v528
                  %v530 = vld [vmem:[%s516 + $0x30] sm:$0xff]
                  %531 = vst [vmem:[%s517 + $0x30] sm:$0xff] %v530
                  %v532 = vld [vmem:[%s516 + $0x38] sm:$0xff]
                  %533 = vst [vmem:[%s517 + $0x38] sm:$0xff] %v532
                  %v534 = vld [vmem:[%s516 + $0x40] sm:$0xff]
                  %535 = vst [vmem:[%s517 + $0x40] sm:$0xff] %v534
                  %v536 = vld [vmem:[%s516 + $0x48] sm:$0xff]
                  %537 = vst [vmem:[%s517 + $0x48] sm:$0xff] %v536
                  %v538 = vld [vmem:[%s516 + $0x50] sm:$0xff]
                  %539 = vst [vmem:[%s517 + $0x50] sm:$0xff] %v538
                  %v540 = vld [vmem:[%s516 + $0x58] sm:$0xff]
                  %541 = vst [vmem:[%s517 + $0x58] sm:$0xff] %v540
                  %v542 = vld [vmem:[%s516 + $0x90] sm:$0xff]
                  %543 = vst [vmem:[%s517 + $0x88] sm:$0xff] %v542
                  %v544 = vld [vmem:[%s516 + $0x98] sm:$0xff]
                  %545 = vst [vmem:[%s517 + $0x90] sm:$0xff] %v544
                  %v546 = vld [vmem:[%s516 + $0xa0] sm:$0xff]
                  %547 = vst [vmem:[%s517 + $0x98] sm:$0xff] %v546
                  %v548 = vld [vmem:[%s516 + $0xa8] sm:$0xff]
                  %549 = vst [vmem:[%s517 + $0xa0] sm:$0xff] %v548
                  %v550 = vld [vmem:[%s516 + $0xb0] sm:$0xff]
                  %551 = vst [vmem:[%s517 + $0xa8] sm:$0xff] %v550
                  %v552 = vld [vmem:[%s516 + $0xb8] sm:$0xff]
                  %553 = vst [vmem:[%s517 + $0xb0] sm:$0xff] %v552
                  %v554 = vld [vmem:[%s516 + $0xc0] sm:$0xff]
                  %555 = vst [vmem:[%s517 + $0xb8] sm:$0xff] %v554
                  %v556 = vld [vmem:[%s516 + $0xc8] sm:$0xff]
                  %557 = vst [vmem:[%s517 + $0xc0] sm:$0xff] %v556
                  %v558 = vld [vmem:[%s516 + $0xd0] sm:$0xff]
                  %559 = vst [vmem:[%s517 + $0xc8] sm:$0xff] %v558
                  %v560 = vld [vmem:[%s516 + $0xd8] sm:$0xff]
                  %561 = vst [vmem:[%s517 + $0xd0] sm:$0xff] %v560
                  %v562 = vld [vmem:[%s516 + $0xe0] sm:$0xff]
                  %563 = vst [vmem:[%s517 + $0xd8] sm:$0xff] %v562
                  %v564 = vld [vmem:[%s516 + $0xe8] sm:$0xff]
                  %565 = vst [vmem:[%s517 + $0xe0] sm:$0xff] %v564
                  %v566 = vld [vmem:[%s516 + $0x120] sm:$0xff]
                  %567 = vst [vmem:[%s517 + $0x110] sm:$0xff] %v566
                  %v568 = vld [vmem:[%s516 + $0x128] sm:$0xff]
                  %569 = vst [vmem:[%s517 + $0x118] sm:$0xff] %v568
                  %v570 = vld [vmem:[%s516 + $0x130] sm:$0xff]
                  %571 = vst [vmem:[%s517 + $0x120] sm:$0xff] %v570
                  %v572 = vld [vmem:[%s516 + $0x138] sm:$0xff]
                  %573 = vst [vmem:[%s517 + $0x128] sm:$0xff] %v572
                  %v574 = vld [vmem:[%s516 + $0x140] sm:$0xff]
                  %575 = vst [vmem:[%s517 + $0x130] sm:$0xff] %v574
                  %v576 = vld [vmem:[%s516 + $0x148] sm:$0xff]
                  %577 = vst [vmem:[%s517 + $0x138] sm:$0xff] %v576
                  %v578 = vld [vmem:[%s516 + $0x150] sm:$0xff]
                  %579 = vst [vmem:[%s517 + $0x140] sm:$0xff] %v578
                  %v580 = vld [vmem:[%s516 + $0x158] sm:$0xff]
                  %581 = vst [vmem:[%s517 + $0x148] sm:$0xff] %v580
                  %v582 = vld [vmem:[%s516 + $0x160] sm:$0xff]
                  %583 = vst [vmem:[%s517 + $0x150] sm:$0xff] %v582
                  %v584 = vld [vmem:[%s516 + $0x168] sm:$0xff]
                  %585 = vst [vmem:[%s517 + $0x158] sm:$0xff] %v584
                  %v586 = vld [vmem:[%s516 + $0x170] sm:$0xff]
                  %587 = vst [vmem:[%s517 + $0x160] sm:$0xff] %v586
                  %v588 = vld [vmem:[%s516 + $0x178] sm:$0xff]
                  %589 = vst [vmem:[%s517 + $0x168] sm:$0xff] %v588
                  %v590 = vld [vmem:[%s516 + $0x1b0] sm:$0xff]
                  %591 = vst [vmem:[%s517 + $0x198] sm:$0xff] %v590
                  %v592 = vld [vmem:[%s516 + $0x1b8] sm:$0xff]
                  %593 = vst [vmem:[%s517 + $0x1a0] sm:$0xff] %v592
                  %v594 = vld [vmem:[%s516 + $0x1c0] sm:$0xff]
                  %595 = vst [vmem:[%s517 + $0x1a8] sm:$0xff] %v594
                  %v596 = vld [vmem:[%s516 + $0x1c8] sm:$0xff]
                  %597 = vst [vmem:[%s517 + $0x1b0] sm:$0xff] %v596
                  %v598 = vld [vmem:[%s516 + $0x1d0] sm:$0xff]
                  %599 = vst [vmem:[%s517 + $0x1b8] sm:$0xff] %v598
                  %v600 = vld [vmem:[%s516 + $0x1d8] sm:$0xff]
                  %601 = vst [vmem:[%s517 + $0x1c0] sm:$0xff] %v600
                  %v602 = vld [vmem:[%s516 + $0x1e0] sm:$0xff]
                  %603 = vst [vmem:[%s517 + $0x1c8] sm:$0xff] %v602
                  %v604 = vld [vmem:[%s516 + $0x1e8] sm:$0xff]
                  %605 = vst [vmem:[%s517 + $0x1d0] sm:$0xff] %v604
                  %v606 = vld [vmem:[%s516 + $0x1f0] sm:$0xff]
                  %607 = vst [vmem:[%s517 + $0x1d8] sm:$0xff] %v606
                  %v608 = vld [vmem:[%s516 + $0x1f8] sm:$0xff]
                  %609 = vst [vmem:[%s517 + $0x1e0] sm:$0xff] %v608
                  %v610 = vld [vmem:[%s516 + $0x200] sm:$0xff]
                  %611 = vst [vmem:[%s517 + $0x1e8] sm:$0xff] %v610
                  %v612 = vld [vmem:[%s516 + $0x208] sm:$0xff]
                  %613 = vst [vmem:[%s517 + $0x1f0] sm:$0xff] %v612
                  %v614 = vld [vmem:[%s516 + $0x240] sm:$0xff]
                  %615 = vst [vmem:[%s517 + $0x220] sm:$0xff] %v614
                  %v616 = vld [vmem:[%s516 + $0x248] sm:$0xff]
                  %617 = vst [vmem:[%s517 + $0x228] sm:$0xff] %v616
                  %v618 = vld [vmem:[%s516 + $0x250] sm:$0xff]
                  %619 = vst [vmem:[%s517 + $0x230] sm:$0xff] %v618
                  %v620 = vld [vmem:[%s516 + $0x258] sm:$0xff]
                  %621 = vst [vmem:[%s517 + $0x238] sm:$0xff] %v620
                  %v622 = vld [vmem:[%s516 + $0x260] sm:$0xff]
                  %623 = vst [vmem:[%s517 + $0x240] sm:$0xff] %v622
                  %v624 = vld [vmem:[%s516 + $0x268] sm:$0xff]
                  %625 = vst [vmem:[%s517 + $0x248] sm:$0xff] %v624
                  %v626 = vld [vmem:[%s516 + $0x270] sm:$0xff]
                  %627 = vst [vmem:[%s517 + $0x250] sm:$0xff] %v626
                  %v628 = vld [vmem:[%s516 + $0x278] sm:$0xff]
                  %629 = vst [vmem:[%s517 + $0x258] sm:$0xff] %v628
                  %v630 = vld [vmem:[%s516 + $0x280] sm:$0xff]
                  %631 = vst [vmem:[%s517 + $0x260] sm:$0xff] %v630
                  %v632 = vld [vmem:[%s516 + $0x288] sm:$0xff]
                  %633 = vst [vmem:[%s517 + $0x268] sm:$0xff] %v632
                  %v634 = vld [vmem:[%s516 + $0x290] sm:$0xff]
                  %635 = vst [vmem:[%s517 + $0x270] sm:$0xff] %v634
                  %v636 = vld [vmem:[%s516 + $0x298] sm:$0xff]
                  %637 = vst [vmem:[%s517 + $0x278] sm:$0xff] %v636
                  %v638 = vld [vmem:[%s516 + $0x2d0] sm:$0xff]
                  %639 = vst [vmem:[%s517 + $0x2a8] sm:$0xff] %v638
                  %v640 = vld [vmem:[%s516 + $0x2d8] sm:$0xff]
                  %641 = vst [vmem:[%s517 + $0x2b0] sm:$0xff] %v640
                  %v642 = vld [vmem:[%s516 + $0x2e0] sm:$0xff]
                  %643 = vst [vmem:[%s517 + $0x2b8] sm:$0xff] %v642
                  %v644 = vld [vmem:[%s516 + $0x2e8] sm:$0xff]
                  %645 = vst [vmem:[%s517 + $0x2c0] sm:$0xff] %v644
                  %v646 = vld [vmem:[%s516 + $0x2f0] sm:$0xff]
                  %647 = vst [vmem:[%s517 + $0x2c8] sm:$0xff] %v646
                  %v648 = vld [vmem:[%s516 + $0x2f8] sm:$0xff]
                  %649 = vst [vmem:[%s517 + $0x2d0] sm:$0xff] %v648
                  %v650 = vld [vmem:[%s516 + $0x300] sm:$0xff]
                  %651 = vst [vmem:[%s517 + $0x2d8] sm:$0xff] %v650
                  %v652 = vld [vmem:[%s516 + $0x308] sm:$0xff]
                  %653 = vst [vmem:[%s517 + $0x2e0] sm:$0xff] %v652
                  %v654 = vld [vmem:[%s516 + $0x310] sm:$0xff]
                  %655 = vst [vmem:[%s517 + $0x2e8] sm:$0xff] %v654
                  %v656 = vld [vmem:[%s516 + $0x318] sm:$0xff]
                  %657 = vst [vmem:[%s517 + $0x2f0] sm:$0xff] %v656
                  %v658 = vld [vmem:[%s516 + $0x320] sm:$0xff]
                  %659 = vst [vmem:[%s517 + $0x2f8] sm:$0xff] %v658
                  %v660 = vld [vmem:[%s516 + $0x328] sm:$0xff]
                  %661 = vst [vmem:[%s517 + $0x300] sm:$0xff] %v660
                  %v662 = vld [vmem:[%s516 + $0x360] sm:$0xff]
                  %663 = vst [vmem:[%s517 + $0x330] sm:$0xff] %v662
                  %v664 = vld [vmem:[%s516 + $0x368] sm:$0xff]
                  %665 = vst [vmem:[%s517 + $0x338] sm:$0xff] %v664
                  %v666 = vld [vmem:[%s516 + $0x370] sm:$0xff]
                  %667 = vst [vmem:[%s517 + $0x340] sm:$0xff] %v666
                  %v668 = vld [vmem:[%s516 + $0x378] sm:$0xff]
                  %669 = vst [vmem:[%s517 + $0x348] sm:$0xff] %v668
                  %v670 = vld [vmem:[%s516 + $0x380] sm:$0xff]
                  %671 = vst [vmem:[%s517 + $0x350] sm:$0xff] %v670
                  %v672 = vld [vmem:[%s516 + $0x388] sm:$0xff]
                  %673 = vst [vmem:[%s517 + $0x358] sm:$0xff] %v672
                  %v674 = vld [vmem:[%s516 + $0x390] sm:$0xff]
                  %675 = vst [vmem:[%s517 + $0x360] sm:$0xff] %v674
                  %v676 = vld [vmem:[%s516 + $0x398] sm:$0xff]
                  %677 = vst [vmem:[%s517 + $0x368] sm:$0xff] %v676
                  %v678 = vld [vmem:[%s516 + $0x3a0] sm:$0xff]
                  %679 = vst [vmem:[%s517 + $0x370] sm:$0xff] %v678
                  %v680 = vld [vmem:[%s516 + $0x3a8] sm:$0xff]
                  %681 = vst [vmem:[%s517 + $0x378] sm:$0xff] %v680
                  %v682 = vld [vmem:[%s516 + $0x3b0] sm:$0xff]
                  %683 = vst [vmem:[%s517 + $0x380] sm:$0xff] %v682
                  %v684 = vld [vmem:[%s516 + $0x3b8] sm:$0xff]
                  %685 = vst [vmem:[%s517 + $0x388] sm:$0xff] %v684
                  %s686 = sadd.s32 1, %s515
                  %p687 = scmp.ge.s32.totalorder %s686, %s503
                  %s688 = scalar_select %p687, 0, %s686
                  %s689 = sadd.s32 1, %s514
                  %s690 = scalar_select %p687, %s689, %s514
                  %p691 = scmp.ge.s32.totalorder %s690, %s501
                  %s692 = scalar_select %p691, 0, %s690
                  %s693 = smul.u32 %s692, 1008
                  %s694 = smul.u32 %s688, 96
                  %s695 = sadd.s32 %s693, %s694
                  %s696 = smul.u32 %s692, 952
                  %s697 = smul.u32 %s688, 96
                  %s698 = sadd.s32 %s696, %s697
                  %s699 = scalar_lea.vmem %s115, %s695
                  %s700 = scalar_lea.vmem %s100, %s698 [#allocation2]
                $region80: #{tpu_custom_call.1} parent=74 // loop_footer
                  %s511 = sadd.s32 %s509, 1
                $region81: #{tpu_custom_call.1} parent=74 // loop_footer_branch
                  %508 = sbr.rel target = $region77
                $region82: #{tpu_custom_call.1} parent=74 // loop_exit
                  _
                %s701 = sdiv.u32.pop %s500, 12
                %s702 = srem.u32.pop %s500, 12
                %s703 = sdiv.u32.pop %s105, 7
                %s704 = srem.u32.pop %s105, 7
                %s705 = smul.u32 %s703, 7
                %s706 = smul.u32 144, %s705
                %s707 = scalar_lea.vmem %s115, %s706
                %s708 = smul.u32 136, %s705
                %s709 = scalar_lea.vmem %s100, %s708 [#allocation2]
                %s710 = smul.u32 %s704, %s701
                // While loop
                $region83: #{tpu_custom_call.1} parent=74 // loop_pre_header
                  _
                $region84: #{tpu_custom_call.1} parent=74 // loop_header
                  %s714 = sphi 0, %s716
                  %p715 = scmp.ge.s32.totalorder %s714, %s710
                  %s719 = sphi 0, %s753
                  %s720 = sphi 0, %s749
                  %s721 = sphi %s707, %s760
                  %s722 = sphi %s709, %s761
                $region85: #{tpu_custom_call.1} parent=74 // loop_header_branch
                  %718 = sbr.rel (%p715) target = $region89
                $region86: #{tpu_custom_call.1} parent=74 // loop_body
                  %v723 = vld [vmem:[%s721] sm:$0xff]
                  %724 = vst [vmem:[%s722] sm:$0xff] %v723
                  %v725 = vld [vmem:[%s721 + $0x8] sm:$0xff]
                  %726 = vst [vmem:[%s722 + $0x8] sm:$0xff] %v725
                  %v727 = vld [vmem:[%s721 + $0x10] sm:$0xff]
                  %728 = vst [vmem:[%s722 + $0x10] sm:$0xff] %v727
                  %v729 = vld [vmem:[%s721 + $0x18] sm:$0xff]
                  %730 = vst [vmem:[%s722 + $0x18] sm:$0xff] %v729
                  %v731 = vld [vmem:[%s721 + $0x20] sm:$0xff]
                  %732 = vst [vmem:[%s722 + $0x20] sm:$0xff] %v731
                  %v733 = vld [vmem:[%s721 + $0x28] sm:$0xff]
                  %734 = vst [vmem:[%s722 + $0x28] sm:$0xff] %v733
                  %v735 = vld [vmem:[%s721 + $0x30] sm:$0xff]
                  %736 = vst [vmem:[%s722 + $0x30] sm:$0xff] %v735
                  %v737 = vld [vmem:[%s721 + $0x38] sm:$0xff]
                  %738 = vst [vmem:[%s722 + $0x38] sm:$0xff] %v737
                  %v739 = vld [vmem:[%s721 + $0x40] sm:$0xff]
                  %740 = vst [vmem:[%s722 + $0x40] sm:$0xff] %v739
                  %v741 = vld [vmem:[%s721 + $0x48] sm:$0xff]
                  %742 = vst [vmem:[%s722 + $0x48] sm:$0xff] %v741
                  %v743 = vld [vmem:[%s721 + $0x50] sm:$0xff]
                  %744 = vst [vmem:[%s722 + $0x50] sm:$0xff] %v743
                  %v745 = vld [vmem:[%s721 + $0x58] sm:$0xff]
                  %746 = vst [vmem:[%s722 + $0x58] sm:$0xff] %v745
                  %s747 = sadd.s32 1, %s720
                  %p748 = scmp.ge.s32.totalorder %s747, %s701
                  %s749 = scalar_select %p748, 0, %s747
                  %s750 = sadd.s32 1, %s719
                  %s751 = scalar_select %p748, %s750, %s719
                  %p752 = scmp.ge.s32.totalorder %s751, %s704
                  %s753 = scalar_select %p752, 0, %s751
                  %s754 = smul.u32 %s753, 144
                  %s755 = smul.u32 %s749, 96
                  %s756 = sadd.s32 %s754, %s755
                  %s757 = smul.u32 %s753, 136
                  %s758 = smul.u32 %s749, 96
                  %s759 = sadd.s32 %s757, %s758
                  %s760 = scalar_lea.vmem %s707, %s756
                  %s761 = scalar_lea.vmem %s709, %s759 [#allocation2]
                $region87: #{tpu_custom_call.1} parent=74 // loop_footer
                  %s716 = sadd.s32 %s714, 1
                $region88: #{tpu_custom_call.1} parent=74 // loop_footer_branch
                  %713 = sbr.rel target = $region84
                $region89: #{tpu_custom_call.1} parent=74 // loop_exit
                  _
                %s762 = sdiv.u32.pop %s500, 12
                %s763 = srem.u32.pop %s500, 12
                %s764 = smul.u32 %s762, 12
                %s765 = smul.u32 128, %s764
                %s766 = sshra.s32 %s765, 4
                %s767 = scalar_lea.vmem %s115, %s766
                %s768 = smul.u32 128, %s764
                %s769 = sshra.s32 %s768, 4
                %s770 = scalar_lea.vmem %s100, %s769 [#allocation2]
                %s771 = smul.u32 %s105, %s763
                // While loop
                $region90: #{tpu_custom_call.1} parent=74 // loop_pre_header
                  _
                $region91: #{tpu_custom_call.1} parent=74 // loop_header
                  %s775 = sphi 0, %s777
                  %p776 = scmp.ge.s32.totalorder %s775, %s771
                  %s780 = sphi 0, %s792
                  %s781 = sphi 0, %s788
                  %s782 = sphi %s767, %s799
                  %s783 = sphi %s770, %s800
                $region92: #{tpu_custom_call.1} parent=74 // loop_header_branch
                  %779 = sbr.rel (%p776) target = $region96
                $region93: #{tpu_custom_call.1} parent=74 // loop_body
                  %v784 = vld [vmem:[%s782] sm:$0xff]
                  %785 = vst [vmem:[%s783] sm:$0xff] %v784
                  %s786 = sadd.s32 1, %s781
                  %p787 = scmp.ge.s32.totalorder %s786, %s763
                  %s788 = scalar_select %p787, 0, %s786
                  %s789 = sadd.s32 1, %s780
                  %s790 = scalar_select %p787, %s789, %s780
                  %p791 = scmp.ge.s32.totalorder %s790, %s105
                  %s792 = scalar_select %p791, 0, %s790
                  %s793 = smul.u32 %s792, 144
                  %s794 = smul.u32 %s788, 8
                  %s795 = sadd.s32 %s793, %s794
                  %s796 = smul.u32 %s792, 136
                  %s797 = smul.u32 %s788, 8
                  %s798 = sadd.s32 %s796, %s797
                  %s799 = scalar_lea.vmem %s767, %s795
                  %s800 = scalar_lea.vmem %s770, %s798 [#allocation2]
                $region94: #{tpu_custom_call.1} parent=74 // loop_footer
                  %s777 = sadd.s32 %s775, 1
                $region95: #{tpu_custom_call.1} parent=74 // loop_footer_branch
                  %774 = sbr.rel target = $region91
                $region96: #{tpu_custom_call.1} parent=74 // loop_exit
                  _
                %s801 = sshll.u32 1, %s495
                %s802 = ssub.s32 %s801, 1
                %s803 = sdiv.u32.pop %s105, 7
                %s804 = srem.u32.pop %s105, 7
                // While loop
                $region97: #{tpu_custom_call.1} parent=74 // loop_pre_header
                  _
                $region98: #{tpu_custom_call.1} parent=74 // loop_header
                  %s806 = sphi 0, %s808
                  %p807 = scmp.ge.s32.totalorder %s806, %s803
                  %s811 = sphi 0, %s830
                  %s812 = sphi %s497, %s833
                  %s813 = sphi %s499, %s834
                $region99: #{tpu_custom_call.1} parent=74 // loop_header_branch
                  %810 = sbr.rel (%p807) target = $region103
                $region100: #{tpu_custom_call.1} parent=74 // loop_body
                  %v814 = vld [vmem:[%s812] sm:%s802]
                  %815 = vst [vmem:[%s813] sm:%s802] %v814
                  %v816 = vld [vmem:[%s812 + $0x90] sm:%s802]
                  %817 = vst [vmem:[%s813 + $0x88] sm:%s802] %v816
                  %v818 = vld [vmem:[%s812 + $0x120] sm:%s802]
                  %819 = vst [vmem:[%s813 + $0x110] sm:%s802] %v818
                  %v820 = vld [vmem:[%s812 + $0x1b0] sm:%s802]
                  %821 = vst [vmem:[%s813 + $0x198] sm:%s802] %v820
                  %v822 = vld [vmem:[%s812 + $0x240] sm:%s802]
                  %823 = vst [vmem:[%s813 + $0x220] sm:%s802] %v822
                  %v824 = vld [vmem:[%s812 + $0x2d0] sm:%s802]
                  %825 = vst [vmem:[%s813 + $0x2a8] sm:%s802] %v824
                  %v826 = vld [vmem:[%s812 + $0x360] sm:%s802]
                  %827 = vst [vmem:[%s813 + $0x330] sm:%s802] %v826
                  %s828 = sadd.s32 1, %s811
                  %p829 = scmp.ge.s32.totalorder %s828, %s803
                  %s830 = scalar_select %p829, 0, %s828
                  %s831 = smul.u32 %s830, 1008
                  %s832 = smul.u32 %s830, 952
                  %s833 = scalar_lea.vmem %s497, %s831
                  %s834 = scalar_lea.vmem %s499, %s832 [#allocation2]
                $region101: #{tpu_custom_call.1} parent=74 // loop_footer
                  %s808 = sadd.s32 %s806, 1
                $region102: #{tpu_custom_call.1} parent=74 // loop_footer_branch
                  %805 = sbr.rel target = $region98
                $region103: #{tpu_custom_call.1} parent=74 // loop_exit
                  _
                %s835 = sdiv.u32.pop %s105, 7
                %s836 = srem.u32.pop %s105, 7
                %s837 = smul.u32 %s835, 7
                %s838 = smul.u32 144, %s837
                %s839 = scalar_lea.vmem %s497, %s838
                %s840 = smul.u32 136, %s837
                %s841 = scalar_lea.vmem %s499, %s840 [#allocation2]
                // While loop
                $region104: #{tpu_custom_call.1} parent=74 // loop_pre_header
                  _
                $region105: #{tpu_custom_call.1} parent=74 // loop_header
                  %s843 = sphi 0, %s845
                  %p844 = scmp.ge.s32.totalorder %s843, %s836
                  %s848 = sphi 0, %s855
                  %s849 = sphi %s839, %s858
                  %s850 = sphi %s841, %s859
                $region106: #{tpu_custom_call.1} parent=74 // loop_header_branch
                  %847 = sbr.rel (%p844) target = $region110
                $region107: #{tpu_custom_call.1} parent=74 // loop_body
                  %v851 = vld [vmem:[%s849] sm:%s802]
                  %852 = vst [vmem:[%s850] sm:%s802] %v851
                  %s853 = sadd.s32 1, %s848
                  %p854 = scmp.ge.s32.totalorder %s853, %s836
                  %s855 = scalar_select %p854, 0, %s853
                  %s856 = smul.u32 %s855, 144
                  %s857 = smul.u32 %s855, 136
                  %s858 = scalar_lea.vmem %s839, %s856
                  %s859 = scalar_lea.vmem %s841, %s857 [#allocation2]
                $region108: #{tpu_custom_call.1} parent=74 // loop_footer
                  %s845 = sadd.s32 %s843, 1
                $region109: #{tpu_custom_call.1} parent=74 // loop_footer_branch
                  %842 = sbr.rel target = $region105
                $region110: #{tpu_custom_call.1} parent=74 // loop_exit
                  _
              $region75: #{tpu_custom_call.1} parent=27 // pred_fallthru
                _
            $region28: #{tpu_custom_call.1} parent=23 // pred_fallthru
              _
            // Predicated region
            $region29: #{tpu_custom_call.1} parent=23 // pred_check
              %p124 = pneg %p120
            $region30: #{tpu_custom_call.1} parent=23 // pred_check_branch
              %126 = sbr.rel (%p124) target = $region32
            $region31: #{tpu_custom_call.1} parent=23 // pred_region
              %s127 = sshll.u32 1, %s116
              %s128 = ssub.s32 %s127, 1
              %s129 = sdiv.u32.pop %s105, 7
              %s130 = srem.u32.pop %s105, 7
              // While loop
              $region33: #{tpu_custom_call.1} parent=31 // loop_pre_header
                _
              $region34: #{tpu_custom_call.1} parent=31 // loop_header
                %s132 = sphi 0, %s134
                %p133 = scmp.ge.s32.totalorder %s132, %s129
                %s137 = sphi 0, %s156
                %s138 = sphi %s115, %s159
                %s139 = sphi %s100, %s160
              $region35: #{tpu_custom_call.1} parent=31 // loop_header_branch
                %136 = sbr.rel (%p133) target = $region39
              $region36: #{tpu_custom_call.1} parent=31 // loop_body
                %v140 = vld [vmem:[%s138] sm:%s128]
                %141 = vst [vmem:[%s139] sm:%s128] %v140
                %v142 = vld [vmem:[%s138 + $0x90] sm:%s128]
                %143 = vst [vmem:[%s139 + $0x88] sm:%s128] %v142
                %v144 = vld [vmem:[%s138 + $0x120] sm:%s128]
                %145 = vst [vmem:[%s139 + $0x110] sm:%s128] %v144
                %v146 = vld [vmem:[%s138 + $0x1b0] sm:%s128]
                %147 = vst [vmem:[%s139 + $0x198] sm:%s128] %v146
                %v148 = vld [vmem:[%s138 + $0x240] sm:%s128]
                %149 = vst [vmem:[%s139 + $0x220] sm:%s128] %v148
                %v150 = vld [vmem:[%s138 + $0x2d0] sm:%s128]
                %151 = vst [vmem:[%s139 + $0x2a8] sm:%s128] %v150
                %v152 = vld [vmem:[%s138 + $0x360] sm:%s128]
                %153 = vst [vmem:[%s139 + $0x330] sm:%s128] %v152
                %s154 = sadd.s32 1, %s137
                %p155 = scmp.ge.s32.totalorder %s154, %s129
                %s156 = scalar_select %p155, 0, %s154
                %s157 = smul.u32 %s156, 1008
                %s158 = smul.u32 %s156, 952
                %s159 = scalar_lea.vmem %s115, %s157
                %s160 = scalar_lea.vmem %s100, %s158 [#allocation2]
              $region37: #{tpu_custom_call.1} parent=31 // loop_footer
                %s134 = sadd.s32 %s132, 1
              $region38: #{tpu_custom_call.1} parent=31 // loop_footer_branch
                %131 = sbr.rel target = $region34
              $region39: #{tpu_custom_call.1} parent=31 // loop_exit
                _
              %s161 = sdiv.u32.pop %s105, 7
              %s162 = srem.u32.pop %s105, 7
              %s163 = smul.u32 %s161, 7
              %s164 = smul.u32 144, %s163
              %s165 = scalar_lea.vmem %s115, %s164
              %s166 = smul.u32 136, %s163
              %s167 = scalar_lea.vmem %s100, %s166 [#allocation2]
              // While loop
              $region40: #{tpu_custom_call.1} parent=31 // loop_pre_header
                _
              $region41: #{tpu_custom_call.1} parent=31 // loop_header
                %s169 = sphi 0, %s171
                %p170 = scmp.ge.s32.totalorder %s169, %s162
                %s174 = sphi 0, %s181
                %s175 = sphi %s165, %s184
                %s176 = sphi %s167, %s185
              $region42: #{tpu_custom_call.1} parent=31 // loop_header_branch
                %173 = sbr.rel (%p170) target = $region46
              $region43: #{tpu_custom_call.1} parent=31 // loop_body
                %v177 = vld [vmem:[%s175] sm:%s128]
                %178 = vst [vmem:[%s176] sm:%s128] %v177
                %s179 = sadd.s32 1, %s174
                %p180 = scmp.ge.s32.totalorder %s179, %s162
                %s181 = scalar_select %p180, 0, %s179
                %s182 = smul.u32 %s181, 144
                %s183 = smul.u32 %s181, 136
                %s184 = scalar_lea.vmem %s165, %s182
                %s185 = scalar_lea.vmem %s167, %s183 [#allocation2]
              $region44: #{tpu_custom_call.1} parent=31 // loop_footer
                %s171 = sadd.s32 %s169, 1
              $region45: #{tpu_custom_call.1} parent=31 // loop_footer_branch
                %168 = sbr.rel target = $region41
              $region46: #{tpu_custom_call.1} parent=31 // loop_exit
                _
            $region32: #{tpu_custom_call.1} parent=23 // pred_fallthru
              _
          $region24: #{tpu_custom_call.1} parent=19 // pred_fallthru
            _
          %860 = vnop
        $region20: #{tpu_custom_call.1} parent=15 // pred_fallthru
          _
      $region16: #{tpu_custom_call.1} parent=5 // pred_fallthru
        _
      %p861 = scmp.le.s32.totalorder 1, %s7
      %p862 = scmp.lt.s32.totalorder %s7, 4
      %p863 = pnand %p861, %p862
      %p864 = pneg %p863
      // Predicated region
      $region111: #{tpu_custom_call.1} parent=5 // pred_check
        _
      $region112: #{tpu_custom_call.1} parent=5 // pred_check_branch
        %866 = sbr.rel (%p863) target = $region114
      $region113: #{tpu_custom_call.1} parent=5 // pred_region
        %s867 = ssub.s32 %s7, 1
        %s868 = sand.u32 %s34, 1
        %s869 = sand.u32 %s34, 1
        %s870 = smul.addr %s869, 952
        %s871 = scalar_lea.vmem [#allocation2], %s870
        // Predicated region
        $region115: #{tpu_custom_call.1} parent=113 // pred_check
          %p872 = pneg %p47
        $region116: #{tpu_custom_call.1} parent=113 // pred_check_branch
          %874 = sbr.rel (%p872) target = $region118
        $region117: #{tpu_custom_call.1} parent=113 // pred_region
          _
        $region118: #{tpu_custom_call.1} parent=113 // pred_fallthru
          _
        %s875 = sand.u32 %s34, 1
        %s876 = sand.u32 %s34, 1
        %s877 = smul.addr %s876, 952
        %s878 = scalar_lea.vmem [#allocation2], %s877
        %p879 = pneg %p47
        %p880 = pneg %p44
        %p881 = pneg %p75
        %p882 = pneg %p72
        %s883 = sand.u32 %s62, 1
        %s884 = sand.u32 %s62, 1
        %s885 = smul.addr %s884, 952
        %s886 = scalar_lea.vmem [#allocation3], %s885
        %s887 = smul.u32 7, %s16
        %s888 = smul.u32 17, %s17
        %s889 = ssub.s32 16, %s887
        %p890 = scmp.lt.s32.totalorder %s889, 7
        %s891 = scalar_select %p890, %s889, 7
        %s892 = smul.u32 128, %s891
        %s893 = ssub.s32 18, %s888
        %p894 = scmp.lt.s32.totalorder %s893, 17
        %s895 = scalar_select %p894, %s893, 17
        %s896 = smul.u32 %s892, %s895
        %s897 = smul.u32 7, %s16
        %s898 = smul.u32 17, %s17
        %s899 = ssub.s32 16, %s897
        %p900 = scmp.lt.s32.totalorder %s899, 7
        %s901 = scalar_select %p900, %s899, 7
        %s902 = smul.u32 128, %s901
        %s903 = smul.u32 %s902, 17
        %v904 = vld [vmem:[%s871] sm:$0xff]
        %v905 = vld [vmem:[%s871 + $0x8] sm:$0xff]
        %v906 = vld [vmem:[%s871 + $0x10] sm:$0xff]
        %v907 = vld [vmem:[%s871 + $0x18] sm:$0xff]
        %v908 = vld [vmem:[%s871 + $0x20] sm:$0xff]
        %v909 = vld [vmem:[%s871 + $0x28] sm:$0xff]
        %v910 = vld [vmem:[%s871 + $0x30] sm:$0xff]
        %v911 = vld [vmem:[%s871 + $0x38] sm:$0xff]
        %v912 = vld [vmem:[%s871 + $0x40] sm:$0xff]
        %v913 = vld [vmem:[%s871 + $0x48] sm:$0xff]
        %v914 = vld [vmem:[%s871 + $0x50] sm:$0xff]
        %v915 = vld [vmem:[%s871 + $0x58] sm:$0xff]
        %v916 = vld [vmem:[%s871 + $0x60] sm:$0xff]
        %v917 = vld [vmem:[%s871 + $0x68] sm:$0xff]
        %v918 = vld [vmem:[%s871 + $0x70] sm:$0xff]
        %v919 = vld [vmem:[%s871 + $0x78] sm:$0xff]
        %v920 = vld [vmem:[%s871 + $0x80] sm:$0xff]
        %v921 = vld [vmem:[%s871 + $0x88] sm:$0xff]
        %v922 = vld [vmem:[%s871 + $0x90] sm:$0xff]
        %v923 = vld [vmem:[%s871 + $0x98] sm:$0xff]
        %v924 = vld [vmem:[%s871 + $0xa0] sm:$0xff]
        %v925 = vld [vmem:[%s871 + $0xa8] sm:$0xff]
        %v926 = vld [vmem:[%s871 + $0xb0] sm:$0xff]
        %v927 = vld [vmem:[%s871 + $0xb8] sm:$0xff]
        %v928 = vld [vmem:[%s871 + $0xc0] sm:$0xff]
        %v929 = vld [vmem:[%s871 + $0xc8] sm:$0xff]
        %v930 = vld [vmem:[%s871 + $0xd0] sm:$0xff]
        %v931 = vld [vmem:[%s871 + $0xd8] sm:$0xff]
        %v932 = vld [vmem:[%s871 + $0xe0] sm:$0xff]
        %v933 = vld [vmem:[%s871 + $0xe8] sm:$0xff]
        %v934 = vld [vmem:[%s871 + $0xf0] sm:$0xff]
        %v935 = vld [vmem:[%s871 + $0xf8] sm:$0xff]
        %v936 = vld [vmem:[%s871 + $0x100] sm:$0xff]
        %v937 = vld [vmem:[%s871 + $0x108] sm:$0xff]
        %v938 = vld [vmem:[%s871 + $0x110] sm:$0xff]
        %v939 = vld [vmem:[%s871 + $0x118] sm:$0xff]
        %v940 = vld [vmem:[%s871 + $0x120] sm:$0xff]
        %v941 = vld [vmem:[%s871 + $0x128] sm:$0xff]
        %v942 = vld [vmem:[%s871 + $0x130] sm:$0xff]
        %v943 = vld [vmem:[%s871 + $0x138] sm:$0xff]
        %v944 = vld [vmem:[%s871 + $0x140] sm:$0xff]
        %v945 = vld [vmem:[%s871 + $0x148] sm:$0xff]
        %v946 = vld [vmem:[%s871 + $0x150] sm:$0xff]
        %v947 = vld [vmem:[%s871 + $0x158] sm:$0xff]
        %v948 = vld [vmem:[%s871 + $0x160] sm:$0xff]
        %v949 = vld [vmem:[%s871 + $0x168] sm:$0xff]
        %v950 = vld [vmem:[%s871 + $0x170] sm:$0xff]
        %v951 = vld [vmem:[%s871 + $0x178] sm:$0xff]
        %v952 = vld [vmem:[%s871 + $0x180] sm:$0xff]
        %v953 = vld [vmem:[%s871 + $0x188] sm:$0xff]
        %v954 = vld [vmem:[%s871 + $0x190] sm:$0xff]
        %v955 = vld [vmem:[%s871 + $0x198] sm:$0xff]
        %v956 = vld [vmem:[%s871 + $0x1a0] sm:$0xff]
        %v957 = vld [vmem:[%s871 + $0x1a8] sm:$0xff]
        %v958 = vld [vmem:[%s871 + $0x1b0] sm:$0xff]
        %v959 = vld [vmem:[%s871 + $0x1b8] sm:$0xff]
        %v960 = vld [vmem:[%s871 + $0x1c0] sm:$0xff]
        %v961 = vld [vmem:[%s871 + $0x1c8] sm:$0xff]
        %v962 = vld [vmem:[%s871 + $0x1d0] sm:$0xff]
        %v963 = vld [vmem:[%s871 + $0x1d8] sm:$0xff]
        %v964 = vld [vmem:[%s871 + $0x1e0] sm:$0xff]
        %v965 = vld [vmem:[%s871 + $0x1e8] sm:$0xff]
        %v966 = vld [vmem:[%s871 + $0x1f0] sm:$0xff]
        %v967 = vld [vmem:[%s871 + $0x1f8] sm:$0xff]
        %v968 = vld [vmem:[%s871 + $0x200] sm:$0xff]
        %v969 = vld [vmem:[%s871 + $0x208] sm:$0xff]
        %v970 = vld [vmem:[%s871 + $0x210] sm:$0xff]
        %v971 = vld [vmem:[%s871 + $0x218] sm:$0xff]
        %v972 = vld [vmem:[%s871 + $0x220] sm:$0xff]
        %v973 = vld [vmem:[%s871 + $0x228] sm:$0xff]
        %v974 = vld [vmem:[%s871 + $0x230] sm:$0xff]
        %v975 = vld [vmem:[%s871 + $0x238] sm:$0xff]
        %v976 = vld [vmem:[%s871 + $0x240] sm:$0xff]
        %v977 = vld [vmem:[%s871 + $0x248] sm:$0xff]
        %v978 = vld [vmem:[%s871 + $0x250] sm:$0xff]
        %v979 = vld [vmem:[%s871 + $0x258] sm:$0xff]
        %v980 = vld [vmem:[%s871 + $0x260] sm:$0xff]
        %v981 = vld [vmem:[%s871 + $0x268] sm:$0xff]
        %v982 = vld [vmem:[%s871 + $0x270] sm:$0xff]
        %v983 = vld [vmem:[%s871 + $0x278] sm:$0xff]
        %v984 = vld [vmem:[%s871 + $0x280] sm:$0xff]
        %v985 = vld [vmem:[%s871 + $0x288] sm:$0xff]
        %v986 = vld [vmem:[%s871 + $0x290] sm:$0xff]
        %v987 = vld [vmem:[%s871 + $0x298] sm:$0xff]
        %v988 = vld [vmem:[%s871 + $0x2a0] sm:$0xff]
        %v989 = vld [vmem:[%s871 + $0x2a8] sm:$0xff]
        %v990 = vld [vmem:[%s871 + $0x2b0] sm:$0xff]
        %v991 = vld [vmem:[%s871 + $0x2b8] sm:$0xff]
        %v992 = vld [vmem:[%s871 + $0x2c0] sm:$0xff]
        %v993 = vld [vmem:[%s871 + $0x2c8] sm:$0xff]
        %v994 = vld [vmem:[%s871 + $0x2d0] sm:$0xff]
        %v995 = vld [vmem:[%s871 + $0x2d8] sm:$0xff]
        %v996 = vld [vmem:[%s871 + $0x2e0] sm:$0xff]
        %v997 = vld [vmem:[%s871 + $0x2e8] sm:$0xff]
        %v998 = vld [vmem:[%s871 + $0x2f0] sm:$0xff]
        %v999 = vld [vmem:[%s871 + $0x2f8] sm:$0xff]
        %v1000 = vld [vmem:[%s871 + $0x300] sm:$0xff]
        %v1001 = vld [vmem:[%s871 + $0x308] sm:$0xff]
        %v1002 = vld [vmem:[%s871 + $0x310] sm:$0xff]
        %v1003 = vld [vmem:[%s871 + $0x318] sm:$0xff]
        %v1004 = vld [vmem:[%s871 + $0x320] sm:$0xff]
        %v1005 = vld [vmem:[%s871 + $0x328] sm:$0xff]
        %v1006 = vld [vmem:[%s871 + $0x330] sm:$0xff]
        %v1007 = vld [vmem:[%s871 + $0x338] sm:$0xff]
        %v1008 = vld [vmem:[%s871 + $0x340] sm:$0xff]
        %v1009 = vld [vmem:[%s871 + $0x348] sm:$0xff]
        %v1010 = vld [vmem:[%s871 + $0x350] sm:$0xff]
        %v1011 = vld [vmem:[%s871 + $0x358] sm:$0xff]
        %v1012 = vld [vmem:[%s871 + $0x360] sm:$0xff]
        %v1013 = vld [vmem:[%s871 + $0x368] sm:$0xff]
        %v1014 = vld [vmem:[%s871 + $0x370] sm:$0xff]
        %v1015 = vld [vmem:[%s871 + $0x378] sm:$0xff]
        %v1016 = vld [vmem:[%s871 + $0x380] sm:$0xff]
        %v1017 = vld [vmem:[%s871 + $0x388] sm:$0xff]
        %v1018 = vld [vmem:[%s871 + $0x390] sm:$0xff]
        %v1019 = vld [vmem:[%s871 + $0x398] sm:$0xff]
        %v1020 = vld [vmem:[%s871 + $0x3a0] sm:$0xff]
        %v1021 = vld [vmem:[%s871 + $0x3a8] sm:$0xff]
        %v1022 = vld [vmem:[%s871 + $0x3b0] sm:$0xff]
        %1023 = vst [vmem:[%s886] sm:$0xff] %v904
        %1024 = vst [vmem:[%s886 + $0x8] sm:$0xff] %v905
        %1025 = vst [vmem:[%s886 + $0x10] sm:$0xff] %v906
        %1026 = vst [vmem:[%s886 + $0x18] sm:$0xff] %v907
        %1027 = vst [vmem:[%s886 + $0x20] sm:$0xff] %v908
        %1028 = vst [vmem:[%s886 + $0x28] sm:$0xff] %v909
        %1029 = vst [vmem:[%s886 + $0x30] sm:$0xff] %v910
        %1030 = vst [vmem:[%s886 + $0x38] sm:$0xff] %v911
        %1031 = vst [vmem:[%s886 + $0x40] sm:$0xff] %v912
        %1032 = vst [vmem:[%s886 + $0x48] sm:$0xff] %v913
        %1033 = vst [vmem:[%s886 + $0x50] sm:$0xff] %v914
        %1034 = vst [vmem:[%s886 + $0x58] sm:$0xff] %v915
        %1035 = vst [vmem:[%s886 + $0x60] sm:$0xff] %v916
        %1036 = vst [vmem:[%s886 + $0x68] sm:$0xff] %v917
        %1037 = vst [vmem:[%s886 + $0x70] sm:$0xff] %v918
        %1038 = vst [vmem:[%s886 + $0x78] sm:$0xff] %v919
        %vm1039 = vcmask 15360
        %1040 = vst.msk [vmem:[%s886 + $0x80] sm:$0xff] %vm1039, %v920
        %1041 = vst [vmem:[%s886 + $0x88] sm:$0xff] %v921
        %1042 = vst [vmem:[%s886 + $0x90] sm:$0xff] %v922
        %1043 = vst [vmem:[%s886 + $0x98] sm:$0xff] %v923
        %1044 = vst [vmem:[%s886 + $0xa0] sm:$0xff] %v924
        %1045 = vst [vmem:[%s886 + $0xa8] sm:$0xff] %v925
        %1046 = vst [vmem:[%s886 + $0xb0] sm:$0xff] %v926
        %1047 = vst [vmem:[%s886 + $0xb8] sm:$0xff] %v927
        %1048 = vst [vmem:[%s886 + $0xc0] sm:$0xff] %v928
        %1049 = vst [vmem:[%s886 + $0xc8] sm:$0xff] %v929
        %1050 = vst [vmem:[%s886 + $0xd0] sm:$0xff] %v930
        %1051 = vst [vmem:[%s886 + $0xd8] sm:$0xff] %v931
        %1052 = vst [vmem:[%s886 + $0xe0] sm:$0xff] %v932
        %1053 = vst [vmem:[%s886 + $0xe8] sm:$0xff] %v933
        %1054 = vst [vmem:[%s886 + $0xf0] sm:$0xff] %v934
        %1055 = vst [vmem:[%s886 + $0xf8] sm:$0xff] %v935
        %1056 = vst [vmem:[%s886 + $0x100] sm:$0xff] %v936
        %1057 = vst.msk [vmem:[%s886 + $0x108] sm:$0xff] %vm1039, %v937
        %1058 = vst [vmem:[%s886 + $0x110] sm:$0xff] %v938
        %1059 = vst [vmem:[%s886 + $0x118] sm:$0xff] %v939
        %1060 = vst [vmem:[%s886 + $0x120] sm:$0xff] %v940
        %1061 = vst [vmem:[%s886 + $0x128] sm:$0xff] %v941
        %1062 = vst [vmem:[%s886 + $0x130] sm:$0xff] %v942
        %1063 = vst [vmem:[%s886 + $0x138] sm:$0xff] %v943
        %1064 = vst [vmem:[%s886 + $0x140] sm:$0xff] %v944
        %1065 = vst [vmem:[%s886 + $0x148] sm:$0xff] %v945
        %1066 = vst [vmem:[%s886 + $0x150] sm:$0xff] %v946
        %1067 = vst [vmem:[%s886 + $0x158] sm:$0xff] %v947
        %1068 = vst [vmem:[%s886 + $0x160] sm:$0xff] %v948
        %1069 = vst [vmem:[%s886 + $0x168] sm:$0xff] %v949
        %1070 = vst [vmem:[%s886 + $0x170] sm:$0xff] %v950
        %1071 = vst [vmem:[%s886 + $0x178] sm:$0xff] %v951
        %1072 = vst [vmem:[%s886 + $0x180] sm:$0xff] %v952
        %1073 = vst [vmem:[%s886 + $0x188] sm:$0xff] %v953
        %1074 = vst.msk [vmem:[%s886 + $0x190] sm:$0xff] %vm1039, %v954
        %1075 = vst [vmem:[%s886 + $0x198] sm:$0xff] %v955
        %1076 = vst [vmem:[%s886 + $0x1a0] sm:$0xff] %v956
        %1077 = vst [vmem:[%s886 + $0x1a8] sm:$0xff] %v957
        %1078 = vst [vmem:[%s886 + $0x1b0] sm:$0xff] %v958
        %1079 = vst [vmem:[%s886 + $0x1b8] sm:$0xff] %v959
        %1080 = vst [vmem:[%s886 + $0x1c0] sm:$0xff] %v960
        %1081 = vst [vmem:[%s886 + $0x1c8] sm:$0xff] %v961
        %1082 = vst [vmem:[%s886 + $0x1d0] sm:$0xff] %v962
        %1083 = vst [vmem:[%s886 + $0x1d8] sm:$0xff] %v963
        %1084 = vst [vmem:[%s886 + $0x1e0] sm:$0xff] %v964
        %1085 = vst [vmem:[%s886 + $0x1e8] sm:$0xff] %v965
        %1086 = vst [vmem:[%s886 + $0x1f0] sm:$0xff] %v966
        %1087 = vst [vmem:[%s886 + $0x1f8] sm:$0xff] %v967
        %1088 = vst [vmem:[%s886 + $0x200] sm:$0xff] %v968
        %1089 = vst [vmem:[%s886 + $0x208] sm:$0xff] %v969
        %1090 = vst [vmem:[%s886 + $0x210] sm:$0xff] %v970
        %1091 = vst.msk [vmem:[%s886 + $0x218] sm:$0xff] %vm1039, %v971
        %1092 = vst [vmem:[%s886 + $0x220] sm:$0xff] %v972
        %1093 = vst [vmem:[%s886 + $0x228] sm:$0xff] %v973
        %1094 = vst [vmem:[%s886 + $0x230] sm:$0xff] %v974
        %1095 = vst [vmem:[%s886 + $0x238] sm:$0xff] %v975
        %1096 = vst [vmem:[%s886 + $0x240] sm:$0xff] %v976
        %1097 = vst [vmem:[%s886 + $0x248] sm:$0xff] %v977
        %1098 = vst [vmem:[%s886 + $0x250] sm:$0xff] %v978
        %1099 = vst [vmem:[%s886 + $0x258] sm:$0xff] %v979
        %1100 = vst [vmem:[%s886 + $0x260] sm:$0xff] %v980
        %1101 = vst [vmem:[%s886 + $0x268] sm:$0xff] %v981
        %1102 = vst [vmem:[%s886 + $0x270] sm:$0xff] %v982
        %1103 = vst [vmem:[%s886 + $0x278] sm:$0xff] %v983
        %1104 = vst [vmem:[%s886 + $0x280] sm:$0xff] %v984
        %1105 = vst [vmem:[%s886 + $0x288] sm:$0xff] %v985
        %1106 = vst [vmem:[%s886 + $0x290] sm:$0xff] %v986
        %1107 = vst [vmem:[%s886 + $0x298] sm:$0xff] %v987
        %1108 = vst.msk [vmem:[%s886 + $0x2a0] sm:$0xff] %vm1039, %v988
        %1109 = vst [vmem:[%s886 + $0x2a8] sm:$0xff] %v989
        %1110 = vst [vmem:[%s886 + $0x2b0] sm:$0xff] %v990
        %1111 = vst [vmem:[%s886 + $0x2b8] sm:$0xff] %v991
        %1112 = vst [vmem:[%s886 + $0x2c0] sm:$0xff] %v992
        %1113 = vst [vmem:[%s886 + $0x2c8] sm:$0xff] %v993
        %1114 = vst [vmem:[%s886 + $0x2d0] sm:$0xff] %v994
        %1115 = vst [vmem:[%s886 + $0x2d8] sm:$0xff] %v995
        %1116 = vst [vmem:[%s886 + $0x2e0] sm:$0xff] %v996
        %1117 = vst [vmem:[%s886 + $0x2e8] sm:$0xff] %v997
        %1118 = vst [vmem:[%s886 + $0x2f0] sm:$0xff] %v998
        %1119 = vst [vmem:[%s886 + $0x2f8] sm:$0xff] %v999
        %1120 = vst [vmem:[%s886 + $0x300] sm:$0xff] %v1000
        %1121 = vst [vmem:[%s886 + $0x308] sm:$0xff] %v1001
        %1122 = vst [vmem:[%s886 + $0x310] sm:$0xff] %v1002
        %1123 = vst [vmem:[%s886 + $0x318] sm:$0xff] %v1003
        %1124 = vst [vmem:[%s886 + $0x320] sm:$0xff] %v1004
        %1125 = vst.msk [vmem:[%s886 + $0x328] sm:$0xff] %vm1039, %v1005
        %1126 = vst [vmem:[%s886 + $0x330] sm:$0xff] %v1006
        %1127 = vst [vmem:[%s886 + $0x338] sm:$0xff] %v1007
        %1128 = vst [vmem:[%s886 + $0x340] sm:$0xff] %v1008
        %1129 = vst [vmem:[%s886 + $0x348] sm:$0xff] %v1009
        %1130 = vst [vmem:[%s886 + $0x350] sm:$0xff] %v1010
        %1131 = vst [vmem:[%s886 + $0x358] sm:$0xff] %v1011
        %1132 = vst [vmem:[%s886 + $0x360] sm:$0xff] %v1012
        %1133 = vst [vmem:[%s886 + $0x368] sm:$0xff] %v1013
        %1134 = vst [vmem:[%s886 + $0x370] sm:$0xff] %v1014
        %1135 = vst [vmem:[%s886 + $0x378] sm:$0xff] %v1015
        %1136 = vst [vmem:[%s886 + $0x380] sm:$0xff] %v1016
        %1137 = vst [vmem:[%s886 + $0x388] sm:$0xff] %v1017
        %1138 = vst [vmem:[%s886 + $0x390] sm:$0xff] %v1018
        %1139 = vst [vmem:[%s886 + $0x398] sm:$0xff] %v1019
        %1140 = vst [vmem:[%s886 + $0x3a0] sm:$0xff] %v1020
        %1141 = vst [vmem:[%s886 + $0x3a8] sm:$0xff] %v1021
        %1142 = vst.msk [vmem:[%s886 + $0x3b0] sm:$0xff] %vm1039, %v1022
        %s1143 = sand.u32 %s62, 1
        %s1144 = sand.u32 %s62, 1
        %s1145 = smul.addr %s1144, 952
        %s1146 = scalar_lea.vmem [#allocation3], %s1145
        // Predicated region
        $region119: #{tpu_custom_call.1} parent=113 // pred_check
          %p1147 = pneg %p72
        $region120: #{tpu_custom_call.1} parent=113 // pred_check_branch
          %1149 = sbr.rel (%p1147) target = $region122
        $region121: #{tpu_custom_call.1} parent=113 // pred_region
          %s1150 = smul.u32 7, %s16
          %s1151 = smul.u32 17, %s17
          %s1152 = ssub.s32 16, %s1150
          %p1153 = scmp.lt.s32.totalorder %s1152, 7
          %s1154 = scalar_select %p1153, %s1152, 7
          %s1155 = smul.u32 128, %s1154
          %s1156 = smul.u32 %s1155, 17
          %p1157 = scmp.ne.s32.totalorder 0, %s1156
          %s1158 = smul.addr %s1150, 17
          %s1159 = sadd.s32 %s1151, %s1158
          %s1160 = smul.addr %s1159, 8
          %s1161 = scalar_lea.vmem %s1, %s1160
          // Predicated region
          $region123: #{tpu_custom_call.1} parent=121 // pred_check
            %p1162 = pneg %p1157
          $region124: #{tpu_custom_call.1} parent=121 // pred_check_branch
            %1164 = sbr.rel (%p1162) target = $region126
          $region125: #{tpu_custom_call.1} parent=121 // pred_region
            // Predicated region
            $region127: #{tpu_custom_call.1} parent=125 // pred_check
              _
            $region128: #{tpu_custom_call.1} parent=125 // pred_check_branch
              %1166 = sbr.rel (0) target = $region130
            $region129: #{tpu_custom_call.1} parent=125 // pred_region
              %s1167 = sshrl.u32 %s1154, 2
              // While loop
              $region131: #{tpu_custom_call.1} parent=129 // loop_pre_header
                _
              $region132: #{tpu_custom_call.1} parent=129 // loop_header
                %s1169 = sphi 0, %s1171
                %p1170 = scmp.ge.s32.totalorder %s1169, %s1167
                %s1174 = sphi 0, %s1315
                %s1175 = sphi %s1146, %s1318
                %s1176 = sphi %s1161, %s1319
              $region133: #{tpu_custom_call.1} parent=129 // loop_header_branch
                %1173 = sbr.rel (%p1170) target = $region137
              $region134: #{tpu_custom_call.1} parent=129 // loop_body
                %v1177 = vld [vmem:[%s1175] sm:$0xff]
                %1178 = vst [vmem:[%s1176] sm:$0xff] %v1177
                %v1179 = vld [vmem:[%s1175 + $0x88] sm:$0xff]
                %1180 = vst [vmem:[%s1176 + $0x88] sm:$0xff] %v1179
                %v1181 = vld [vmem:[%s1175 + $0x110] sm:$0xff]
                %1182 = vst [vmem:[%s1176 + $0x110] sm:$0xff] %v1181
                %v1183 = vld [vmem:[%s1175 + $0x198] sm:$0xff]
                %1184 = vst [vmem:[%s1176 + $0x198] sm:$0xff] %v1183
                %v1185 = vld [vmem:[%s1175 + $0x8] sm:$0xff]
                %1186 = vst [vmem:[%s1176 + $0x8] sm:$0xff] %v1185
                %v1187 = vld [vmem:[%s1175 + $0x90] sm:$0xff]
                %1188 = vst [vmem:[%s1176 + $0x90] sm:$0xff] %v1187
                %v1189 = vld [vmem:[%s1175 + $0x118] sm:$0xff]
                %1190 = vst [vmem:[%s1176 + $0x118] sm:$0xff] %v1189
                %v1191 = vld [vmem:[%s1175 + $0x1a0] sm:$0xff]
                %1192 = vst [vmem:[%s1176 + $0x1a0] sm:$0xff] %v1191
                %v1193 = vld [vmem:[%s1175 + $0x10] sm:$0xff]
                %1194 = vst [vmem:[%s1176 + $0x10] sm:$0xff] %v1193
                %v1195 = vld [vmem:[%s1175 + $0x98] sm:$0xff]
                %1196 = vst [vmem:[%s1176 + $0x98] sm:$0xff] %v1195
                %v1197 = vld [vmem:[%s1175 + $0x120] sm:$0xff]
                %1198 = vst [vmem:[%s1176 + $0x120] sm:$0xff] %v1197
                %v1199 = vld [vmem:[%s1175 + $0x1a8] sm:$0xff]
                %1200 = vst [vmem:[%s1176 + $0x1a8] sm:$0xff] %v1199
                %v1201 = vld [vmem:[%s1175 + $0x18] sm:$0xff]
                %1202 = vst [vmem:[%s1176 + $0x18] sm:$0xff] %v1201
                %v1203 = vld [vmem:[%s1175 + $0xa0] sm:$0xff]
                %1204 = vst [vmem:[%s1176 + $0xa0] sm:$0xff] %v1203
                %v1205 = vld [vmem:[%s1175 + $0x128] sm:$0xff]
                %1206 = vst [vmem:[%s1176 + $0x128] sm:$0xff] %v1205
                %v1207 = vld [vmem:[%s1175 + $0x1b0] sm:$0xff]
                %1208 = vst [vmem:[%s1176 + $0x1b0] sm:$0xff] %v1207
                %v1209 = vld [vmem:[%s1175 + $0x20] sm:$0xff]
                %1210 = vst [vmem:[%s1176 + $0x20] sm:$0xff] %v1209
                %v1211 = vld [vmem:[%s1175 + $0xa8] sm:$0xff]
                %1212 = vst [vmem:[%s1176 + $0xa8] sm:$0xff] %v1211
                %v1213 = vld [vmem:[%s1175 + $0x130] sm:$0xff]
                %1214 = vst [vmem:[%s1176 + $0x130] sm:$0xff] %v1213
                %v1215 = vld [vmem:[%s1175 + $0x1b8] sm:$0xff]
                %1216 = vst [vmem:[%s1176 + $0x1b8] sm:$0xff] %v1215
                %v1217 = vld [vmem:[%s1175 + $0x28] sm:$0xff]
                %1218 = vst [vmem:[%s1176 + $0x28] sm:$0xff] %v1217
                %v1219 = vld [vmem:[%s1175 + $0xb0] sm:$0xff]
                %1220 = vst [vmem:[%s1176 + $0xb0] sm:$0xff] %v1219
                %v1221 = vld [vmem:[%s1175 + $0x138] sm:$0xff]
                %1222 = vst [vmem:[%s1176 + $0x138] sm:$0xff] %v1221
                %v1223 = vld [vmem:[%s1175 + $0x1c0] sm:$0xff]
                %1224 = vst [vmem:[%s1176 + $0x1c0] sm:$0xff] %v1223
                %v1225 = vld [vmem:[%s1175 + $0x30] sm:$0xff]
                %1226 = vst [vmem:[%s1176 + $0x30] sm:$0xff] %v1225
                %v1227 = vld [vmem:[%s1175 + $0xb8] sm:$0xff]
                %1228 = vst [vmem:[%s1176 + $0xb8] sm:$0xff] %v1227
                %v1229 = vld [vmem:[%s1175 + $0x140] sm:$0xff]
                %1230 = vst [vmem:[%s1176 + $0x140] sm:$0xff] %v1229
                %v1231 = vld [vmem:[%s1175 + $0x1c8] sm:$0xff]
                %1232 = vst [vmem:[%s1176 + $0x1c8] sm:$0xff] %v1231
                %v1233 = vld [vmem:[%s1175 + $0x38] sm:$0xff]
                %1234 = vst [vmem:[%s1176 + $0x38] sm:$0xff] %v1233
                %v1235 = vld [vmem:[%s1175 + $0xc0] sm:$0xff]
                %1236 = vst [vmem:[%s1176 + $0xc0] sm:$0xff] %v1235
                %v1237 = vld [vmem:[%s1175 + $0x148] sm:$0xff]
                %1238 = vst [vmem:[%s1176 + $0x148] sm:$0xff] %v1237
                %v1239 = vld [vmem:[%s1175 + $0x1d0] sm:$0xff]
                %1240 = vst [vmem:[%s1176 + $0x1d0] sm:$0xff] %v1239
                %v1241 = vld [vmem:[%s1175 + $0x40] sm:$0xff]
                %1242 = vst [vmem:[%s1176 + $0x40] sm:$0xff] %v1241
                %v1243 = vld [vmem:[%s1175 + $0xc8] sm:$0xff]
                %1244 = vst [vmem:[%s1176 + $0xc8] sm:$0xff] %v1243
                %v1245 = vld [vmem:[%s1175 + $0x150] sm:$0xff]
                %1246 = vst [vmem:[%s1176 + $0x150] sm:$0xff] %v1245
                %v1247 = vld [vmem:[%s1175 + $0x1d8] sm:$0xff]
                %1248 = vst [vmem:[%s1176 + $0x1d8] sm:$0xff] %v1247
                %v1249 = vld [vmem:[%s1175 + $0x48] sm:$0xff]
                %1250 = vst [vmem:[%s1176 + $0x48] sm:$0xff] %v1249
                %v1251 = vld [vmem:[%s1175 + $0xd0] sm:$0xff]
                %1252 = vst [vmem:[%s1176 + $0xd0] sm:$0xff] %v1251
                %v1253 = vld [vmem:[%s1175 + $0x158] sm:$0xff]
                %1254 = vst [vmem:[%s1176 + $0x158] sm:$0xff] %v1253
                %v1255 = vld [vmem:[%s1175 + $0x1e0] sm:$0xff]
                %1256 = vst [vmem:[%s1176 + $0x1e0] sm:$0xff] %v1255
                %v1257 = vld [vmem:[%s1175 + $0x50] sm:$0xff]
                %1258 = vst [vmem:[%s1176 + $0x50] sm:$0xff] %v1257
                %v1259 = vld [vmem:[%s1175 + $0xd8] sm:$0xff]
                %1260 = vst [vmem:[%s1176 + $0xd8] sm:$0xff] %v1259
                %v1261 = vld [vmem:[%s1175 + $0x160] sm:$0xff]
                %1262 = vst [vmem:[%s1176 + $0x160] sm:$0xff] %v1261
                %v1263 = vld [vmem:[%s1175 + $0x1e8] sm:$0xff]
                %1264 = vst [vmem:[%s1176 + $0x1e8] sm:$0xff] %v1263
                %v1265 = vld [vmem:[%s1175 + $0x58] sm:$0xff]
                %1266 = vst [vmem:[%s1176 + $0x58] sm:$0xff] %v1265
                %v1267 = vld [vmem:[%s1175 + $0xe0] sm:$0xff]
                %1268 = vst [vmem:[%s1176 + $0xe0] sm:$0xff] %v1267
                %v1269 = vld [vmem:[%s1175 + $0x168] sm:$0xff]
                %1270 = vst [vmem:[%s1176 + $0x168] sm:$0xff] %v1269
                %v1271 = vld [vmem:[%s1175 + $0x1f0] sm:$0xff]
                %1272 = vst [vmem:[%s1176 + $0x1f0] sm:$0xff] %v1271
                %v1273 = vld [vmem:[%s1175 + $0x60] sm:$0xff]
                %1274 = vst [vmem:[%s1176 + $0x60] sm:$0xff] %v1273
                %v1275 = vld [vmem:[%s1175 + $0xe8] sm:$0xff]
                %1276 = vst [vmem:[%s1176 + $0xe8] sm:$0xff] %v1275
                %v1277 = vld [vmem:[%s1175 + $0x170] sm:$0xff]
                %1278 = vst [vmem:[%s1176 + $0x170] sm:$0xff] %v1277
                %v1279 = vld [vmem:[%s1175 + $0x1f8] sm:$0xff]
                %1280 = vst [vmem:[%s1176 + $0x1f8] sm:$0xff] %v1279
                %v1281 = vld [vmem:[%s1175 + $0x68] sm:$0xff]
                %1282 = vst [vmem:[%s1176 + $0x68] sm:$0xff] %v1281
                %v1283 = vld [vmem:[%s1175 + $0xf0] sm:$0xff]
                %1284 = vst [vmem:[%s1176 + $0xf0] sm:$0xff] %v1283
                %v1285 = vld [vmem:[%s1175 + $0x178] sm:$0xff]
                %1286 = vst [vmem:[%s1176 + $0x178] sm:$0xff] %v1285
                %v1287 = vld [vmem:[%s1175 + $0x200] sm:$0xff]
                %1288 = vst [vmem:[%s1176 + $0x200] sm:$0xff] %v1287
                %v1289 = vld [vmem:[%s1175 + $0x70] sm:$0xff]
                %1290 = vst [vmem:[%s1176 + $0x70] sm:$0xff] %v1289
                %v1291 = vld [vmem:[%s1175 + $0xf8] sm:$0xff]
                %1292 = vst [vmem:[%s1176 + $0xf8] sm:$0xff] %v1291
                %v1293 = vld [vmem:[%s1175 + $0x180] sm:$0xff]
                %1294 = vst [vmem:[%s1176 + $0x180] sm:$0xff] %v1293
                %v1295 = vld [vmem:[%s1175 + $0x208] sm:$0xff]
                %1296 = vst [vmem:[%s1176 + $0x208] sm:$0xff] %v1295
                %v1297 = vld [vmem:[%s1175 + $0x78] sm:$0xff]
                %1298 = vst [vmem:[%s1176 + $0x78] sm:$0xff] %v1297
                %v1299 = vld [vmem:[%s1175 + $0x100] sm:$0xff]
                %1300 = vst [vmem:[%s1176 + $0x100] sm:$0xff] %v1299
                %v1301 = vld [vmem:[%s1175 + $0x188] sm:$0xff]
                %1302 = vst [vmem:[%s1176 + $0x188] sm:$0xff] %v1301
                %v1303 = vld [vmem:[%s1175 + $0x210] sm:$0xff]
                %1304 = vst [vmem:[%s1176 + $0x210] sm:$0xff] %v1303
                %v1305 = vld [vmem:[%s1175 + $0x80] sm:$0xff]
                %1306 = vst [vmem:[%s1176 + $0x80] sm:$0xff] %v1305
                %v1307 = vld [vmem:[%s1175 + $0x108] sm:$0xff]
                %1308 = vst [vmem:[%s1176 + $0x108] sm:$0xff] %v1307
                %v1309 = vld [vmem:[%s1175 + $0x190] sm:$0xff]
                %1310 = vst [vmem:[%s1176 + $0x190] sm:$0xff] %v1309
                %v1311 = vld [vmem:[%s1175 + $0x218] sm:$0xff]
                %1312 = vst [vmem:[%s1176 + $0x218] sm:$0xff] %v1311
                %s1313 = sadd.s32 1, %s1174
                %p1314 = scmp.ge.s32.totalorder %s1313, %s1167
                %s1315 = scalar_select %p1314, 0, %s1313
                %s1316 = smul.u32 %s1315, 544
                %s1317 = smul.u32 %s1315, 544
                %s1318 = scalar_lea.vmem %s1146, %s1316 [#allocation3]
                %s1319 = scalar_lea.vmem %s1161, %s1317
              $region135: #{tpu_custom_call.1} parent=129 // loop_footer
                %s1171 = sadd.s32 %s1169, 1
              $region136: #{tpu_custom_call.1} parent=129 // loop_footer_branch
                %1168 = sbr.rel target = $region132
              $region137: #{tpu_custom_call.1} parent=129 // loop_exit
                _
              %s1320 = sshrl.u32 %s1154, 2
              %s1321 = sand.u32 %s1154, 3
              %s1322 = smul.u32 %s1320, 4
              %s1323 = smul.u32 136, %s1322
              %s1324 = scalar_lea.vmem %s1146, %s1323 [#allocation3]
              %s1325 = smul.u32 136, %s1322
              %s1326 = scalar_lea.vmem %s1161, %s1325
              // While loop
              $region138: #{tpu_custom_call.1} parent=129 // loop_pre_header
                _
              $region139: #{tpu_custom_call.1} parent=129 // loop_header
                %s1328 = sphi 0, %s1330
                %p1329 = scmp.ge.s32.totalorder %s1328, %s1321
                %s1333 = sphi 0, %s1372
                %s1334 = sphi %s1324, %s1375
                %s1335 = sphi %s1326, %s1376
              $region140: #{tpu_custom_call.1} parent=129 // loop_header_branch
                %1332 = sbr.rel (%p1329) target = $region144
              $region141: #{tpu_custom_call.1} parent=129 // loop_body
                %v1336 = vld [vmem:[%s1334] sm:$0xff]
                %1337 = vst [vmem:[%s1335] sm:$0xff] %v1336
                %v1338 = vld [vmem:[%s1334 + $0x8] sm:$0xff]
                %1339 = vst [vmem:[%s1335 + $0x8] sm:$0xff] %v1338
                %v1340 = vld [vmem:[%s1334 + $0x10] sm:$0xff]
                %1341 = vst [vmem:[%s1335 + $0x10] sm:$0xff] %v1340
                %v1342 = vld [vmem:[%s1334 + $0x18] sm:$0xff]
                %1343 = vst [vmem:[%s1335 + $0x18] sm:$0xff] %v1342
                %v1344 = vld [vmem:[%s1334 + $0x20] sm:$0xff]
                %1345 = vst [vmem:[%s1335 + $0x20] sm:$0xff] %v1344
                %v1346 = vld [vmem:[%s1334 + $0x28] sm:$0xff]
                %1347 = vst [vmem:[%s1335 + $0x28] sm:$0xff] %v1346
                %v1348 = vld [vmem:[%s1334 + $0x30] sm:$0xff]
                %1349 = vst [vmem:[%s1335 + $0x30] sm:$0xff] %v1348
                %v1350 = vld [vmem:[%s1334 + $0x38] sm:$0xff]
                %1351 = vst [vmem:[%s1335 + $0x38] sm:$0xff] %v1350
                %v1352 = vld [vmem:[%s1334 + $0x40] sm:$0xff]
                %1353 = vst [vmem:[%s1335 + $0x40] sm:$0xff] %v1352
                %v1354 = vld [vmem:[%s1334 + $0x48] sm:$0xff]
                %1355 = vst [vmem:[%s1335 + $0x48] sm:$0xff] %v1354
                %v1356 = vld [vmem:[%s1334 + $0x50] sm:$0xff]
                %1357 = vst [vmem:[%s1335 + $0x50] sm:$0xff] %v1356
                %v1358 = vld [vmem:[%s1334 + $0x58] sm:$0xff]
                %1359 = vst [vmem:[%s1335 + $0x58] sm:$0xff] %v1358
                %v1360 = vld [vmem:[%s1334 + $0x60] sm:$0xff]
                %1361 = vst [vmem:[%s1335 + $0x60] sm:$0xff] %v1360
                %v1362 = vld [vmem:[%s1334 + $0x68] sm:$0xff]
                %1363 = vst [vmem:[%s1335 + $0x68] sm:$0xff] %v1362
                %v1364 = vld [vmem:[%s1334 + $0x70] sm:$0xff]
                %1365 = vst [vmem:[%s1335 + $0x70] sm:$0xff] %v1364
                %v1366 = vld [vmem:[%s1334 + $0x78] sm:$0xff]
                %1367 = vst [vmem:[%s1335 + $0x78] sm:$0xff] %v1366
                %v1368 = vld [vmem:[%s1334 + $0x80] sm:$0xff]
                %1369 = vst [vmem:[%s1335 + $0x80] sm:$0xff] %v1368
                %s1370 = sadd.s32 1, %s1333
                %p1371 = scmp.ge.s32.totalorder %s1370, %s1321
                %s1372 = scalar_select %p1371, 0, %s1370
                %s1373 = smul.u32 %s1372, 136
                %s1374 = smul.u32 %s1372, 136
                %s1375 = scalar_lea.vmem %s1324, %s1373 [#allocation3]
                %s1376 = scalar_lea.vmem %s1326, %s1374
              $region142: #{tpu_custom_call.1} parent=129 // loop_footer
                %s1330 = sadd.s32 %s1328, 1
              $region143: #{tpu_custom_call.1} parent=129 // loop_footer_branch
                %1327 = sbr.rel target = $region139
              $region144: #{tpu_custom_call.1} parent=129 // loop_exit
                _
            $region130: #{tpu_custom_call.1} parent=125 // pred_fallthru
              _
            // Predicated region
            $region145: #{tpu_custom_call.1} parent=125 // pred_check
              _
            $region146: #{tpu_custom_call.1} parent=125 // pred_check_branch
              %1378 = sbr.rel target = $region148
            $region147: #{tpu_custom_call.1} parent=125 // pred_region
              _
            $region148: #{tpu_custom_call.1} parent=125 // pred_fallthru
              _
          $region126: #{tpu_custom_call.1} parent=121 // pred_fallthru
            _
          %1379 = vnop
        $region122: #{tpu_custom_call.1} parent=113 // pred_fallthru
          _
      $region114: #{tpu_custom_call.1} parent=5 // pred_fallthru
        _
      %p1380 = scmp.le.s32.totalorder 2, %s7
      // Predicated region
      $region149: #{tpu_custom_call.1} parent=5 // pred_check
        %p1381 = pneg %p1380
      $region150: #{tpu_custom_call.1} parent=5 // pred_check_branch
        %1383 = sbr.rel (%p1381) target = $region152
      $region151: #{tpu_custom_call.1} parent=5 // pred_region
        %s1384 = ssub.s32 %s7, 2
        // Predicated region
        $region153: #{tpu_custom_call.1} parent=151 // pred_check
          %p1385 = pneg %p78
        $region154: #{tpu_custom_call.1} parent=151 // pred_check_branch
          %1387 = sbr.rel (%p1385) target = $region156
        $region155: #{tpu_custom_call.1} parent=151 // pred_region
          %s1388 = sand.u32 %s63, 1
          %s1389 = sand.u32 %s63, 1
          %s1390 = smul.addr %s1389, 952
          %s1391 = scalar_lea.vmem [#allocation3], %s1390
        $region156: #{tpu_custom_call.1} parent=151 // pred_fallthru
          _
      $region152: #{tpu_custom_call.1} parent=5 // pred_fallthru
        _
    $region6: #{tpu_custom_call.1} parent=1 // loop_footer
      %s11 = sadd.s32 1, %s7
    $region7: #{tpu_custom_call.1} parent=1 // loop_footer_branch
      %6 = sbr.rel target = $region3
    $region8: #{tpu_custom_call.1} parent=1 // loop_exit
      _

</llo_original>
